<compile_context>
chip_gen: v5e
topology: v5e:2x2
jax: 0.10.0
libtpu: 0.0.40
codegen_flags: <defaults>
</compile_context>

<pallas_src>
import functools

import jax
import jax.numpy as jnp
from jax.experimental import pallas as pl
from jax.experimental.pallas import tpu as pltpu


def _spatial_attention_kernel(w_ref, x_ref, o_ref, *, ksize, height, width):
    """Fused channel mean/max -> zero-padded KxK conv (2ch -> 1ch) -> sigmoid.

    w_ref : (2*K*K,)      conv weights in SMEM, index = c*K*K + di*K + dj
    x_ref : (Bt, C, H*W)  lane-dense input block (VMEM)
    o_ref : (Bt, 1, H*W)  lane-dense output block (VMEM)
    """
    Bt, C, N = x_ref.shape
    K, H, W = ksize, height, width
    pad = (K - 1) // 2

    # ---- Channel pooling (mean & max over C), streamed over C so at most ~16
    # ---- vregs of input are live at once (no spill churn). -------------------
    chunk_elems = (64 * 1024) // 4
    cc = max(1, min(C, chunk_elems // max(1, Bt * N)))
    ch_sum = None
    ch_max = None
    for c0 in range(0, C, cc):
        c1 = min(C, c0 + cc)
        blk = x_ref[:, c0:c1, :].astype(jnp.float32)        # (Bt, cc, N)
        s = jnp.sum(blk, axis=1)                            # (Bt, N)
        m = jnp.max(blk, axis=1)                            # (Bt, N)
        ch_sum = s if ch_sum is None else ch_sum + s
        ch_max = m if ch_max is None else jnp.maximum(ch_max, m)
    ch_mean = ch_sum * (1.0 / C)

    # ---- KxK conv in the flattened H*W domain --------------------------------
    # out[h*W + w] = sum_{c,di,dj} wgt[c,di,dj] * pooled_c[h+di-pad, w+dj-pad]
    # A (di-pad, dj-pad) shift in 2-D is a flat shift of (di-pad)*W + (dj-pad).
    # Zero padding becomes two masks: a row-range mask on the flat index
    # (depends on di only) and a column mask on (n % W) (depends on dj only).
    n_idx = jax.lax.broadcasted_iota(jnp.int32, (Bt, N), 1)
    col = n_idx % W

    row_masks = []
    for di in range(K):
        lo, hi = (pad - di) * W, (H + pad - di) * W
        m = None
        if lo > 0:
            m = n_idx >= lo
        if hi < N:
            m = (n_idx < hi) if m is None else (m & (n_idx < hi))
        row_masks.append(m)                                  # None => all valid

    col_masks = []
    for dj in range(K):
        lo, hi = pad - dj, W + pad - dj
        m = None
        if lo > 0:
            m = col >= lo
        if hi < W:
            m = (col < hi) if m is None else (m & (col < hi))
        col_masks.append(m)                                  # None => all valid

    acc = jnp.zeros((Bt, N), jnp.float32)
    for c, pooled in enumerate((ch_mean, ch_max)):
        for dj in range(K):
            # Column (lane) shift + column mask hoisted out of the di loop.
            cshift = (pad - dj) % N
            cm = pooled if cshift == 0 else pltpu.roll(pooled, cshift, 1)
            if col_masks[dj] is not None:
                cm = jnp.where(col_masks[dj], cm, 0.0)
            for di in range(K):
                rshift = ((pad - di) * W) % N
                term = cm if rshift == 0 else pltpu.roll(cm, rshift, 1)
                if row_masks[di] is not None:
                    term = jnp.where(row_masks[di], term, 0.0)
                wgt = w_ref[c * K * K + di * K + dj]          # SMEM scalar
                acc = acc + wgt * term

    o_ref[:, 0, :] = jax.nn.sigmoid(acc).astype(o_ref.dtype)


def _pick_batch_block(batch, chans, n, itemsize):
    """Batch elements per grid step: big enough to amortize per-step overhead on
    single-TC v5e/v6e, but keep >= 2 grid steps (both v7x TensorCores fed) and
    cap the double-buffered input block at ~1 MiB of VMEM."""
    max_block_bytes = 1 << 20
    best = 1
    for cand in range(1, batch + 1):
        if batch % cand:
            continue
        if batch >= 2 and batch // cand < 2:
            continue
        if cand * chans * n * itemsize > max_block_bytes:
            continue
        best = cand
    return best


def _spatial_attention_fwd(x_nchw, conv_weight, *, kernel_size):
    assert kernel_size in (3, 7), "kernel size must be 3 or 7"
    B, C, H, W = x_nchw.shape
    K = kernel_size
    N = H * W

    # Lane-dense views: (B, C, H*W) input, (B, 1, H*W) output.  For contiguous
    # NCHW activations these reshapes are free.
    x_flat = x_nchw.reshape(B, C, N)
    w_flat = conv_weight.reshape(2 * K * K).astype(jnp.float32)

    bt = _pick_batch_block(B, C, N, x_nchw.dtype.itemsize)

    out_flat = pl.pallas_call(
        functools.partial(_spatial_attention_kernel, ksize=K, height=H, width=W),
        out_shape=jax.ShapeDtypeStruct((B, 1, N), x_nchw.dtype),
        grid_spec=pltpu.PrefetchScalarGridSpec(
            num_scalar_prefetch=0,
            grid=(B // bt,),
            in_specs=[
                pl.BlockSpec(memory_space=pltpu.MemorySpace.SMEM),   # conv weights
                pl.BlockSpec((bt, C, N), lambda i: (i, 0, 0)),       # x, lane-dense
            ],
            out_specs=pl.BlockSpec((bt, 1, N), lambda i: (i, 0, 0)),
        ),
        compiler_params=pltpu.CompilerParams(
            dimension_semantics=("parallel",)),
    )(w_flat, x_flat)

    return out_flat.reshape(B, 1, H, W)


# Whole forward is jitted (dispatch latency is significant at these sizes).
spatial_attention = jax.jit(_spatial_attention_fwd, static_argnames=("kernel_size",))


if __name__ == "__main__":
    key = jax.random.PRNGKey(0)
    kw, kx = jax.random.split(key)

    B, C, H, W = 2, 64, 16, 16
    K = 7
    fan_in = 2 * K * K
    bound = 1.0 / (fan_in ** 0.5)
    weight = jax.random.uniform(kw, (1, 2, K, K), jnp.float32, -bound, bound)
    x = jax.random.normal(kx, (B, C, H, W), jnp.float32)

    out = spatial_attention(x, weight, kernel_size=K)
    out = jax.block_until_ready(out)
    assert out.shape == (B, 1, H, W), out.shape
    assert bool(jnp.all(jnp.isfinite(out)))

    # Pure-JAX reference (same semantics as the PyTorch module).
    avg = jnp.mean(x, axis=1, keepdims=True)
    mx = jnp.max(x, axis=1, keepdims=True)
    ref_in = jnp.concatenate([avg, mx], axis=1)
    ref = jax.lax.conv_general_dilated(
        ref_in, weight, window_strides=(1, 1), padding="SAME",
        dimension_numbers=("NCHW", "OIHW", "NCHW"),
        precision=jax.lax.Precision.HIGHEST)
    ref = jax.nn.sigmoid(ref)
    max_err = float(jnp.max(jnp.abs(out - ref)))
    assert jnp.allclose(out, ref, atol=1e-4, rtol=1e-4), max_err

    print("KERNEL_OK")
</pallas_src>

<mosaic_0001>
module attributes {stable_mosaic.version = 11 : i64} {
  func.func @_spatial_attention_kernel(%arg0: i32, %arg1: memref<98xf32, #tpu.memory_space<smem>>, %arg2: memref<1x64x256xf32, #tpu.memory_space<vmem>>, %arg3: memref<1x1x256xf32, #tpu.memory_space<vmem>>) attributes {dimension_semantics = [#tpu.dimension_semantics<parallel>], iteration_bounds = array<i64: 2>, scalar_prefetch = 0 : i64, scratch_operands = 0 : i64, tpu.core_type = #tpu.core_type<tc>, window_params = [{transform_indices = @transform_0, window_bounds = array<i64: 98>}, {transform_indices = @transform_1, window_bounds = array<i64: 1, 64, 256>}, {transform_indices = @transform_2, window_bounds = array<i64: 1, 1, 256>}]} {
    %c0 = arith.constant 0 : index
    %c0_0 = arith.constant 0 : index
    %c0_1 = arith.constant 0 : index
    %0 = vector.load %arg2[%c0, %c0_0, %c0_1] : memref<1x64x256xf32, #tpu.memory_space<vmem>>, vector<1x64x256xf32>
    %cst = arith.constant dense<0.000000e+00> : vector<1x256xf32>
    %1 = vector.multi_reduction <add>, %0, %cst [1] : vector<1x64x256xf32> to vector<1x256xf32>
    %cst_2 = arith.constant dense<0xFF800000> : vector<1x256xf32>
    %2 = vector.multi_reduction <maximumf>, %0, %cst_2 [1] : vector<1x64x256xf32> to vector<1x256xf32>
    %cst_3 = arith.constant 1.562500e-02 : f32
    %3 = vector.broadcast %cst_3 : f32 to vector<1x256xf32>
    %4 = arith.mulf %1, %3 : vector<1x256xf32>
    %5 = tpu.iota {dimensions = array<i32: 1>} : vector<1x256xi32>
    %c16_i32 = arith.constant 16 : i32
    %c0_i32 = arith.constant 0 : i32
    %6 = arith.cmpi eq, %c16_i32, %c0_i32 : i32
    %c1_i32 = arith.constant 1 : i32
    %7 = arith.select %6, %c1_i32, %c16_i32 : i32
    %8 = vector.broadcast %7 : i32 to vector<1x256xi32>
    %9 = arith.remsi %5, %8 : vector<1x256xi32>
    %c0_i32_4 = arith.constant 0 : i32
    %10 = vector.broadcast %c0_i32_4 : i32 to vector<1x256xi32>
    %11 = arith.cmpi ne, %9, %10 : vector<1x256xi32>
    %c0_i32_5 = arith.constant 0 : i32
    %12 = vector.broadcast %c0_i32_5 : i32 to vector<1x256xi32>
    %13 = arith.cmpi slt, %9, %12 : vector<1x256xi32>
    %c0_i32_6 = arith.constant 0 : i32
    %14 = arith.cmpi slt, %7, %c0_i32_6 : i32
    %15 = vector.broadcast %14 : i1 to vector<1x256xi1>
    %16 = vector.broadcast %15 : vector<1x256xi1> to vector<1x256xi1>
    %17 = arith.xori %13, %16 : vector<1x256xi1>
    %18 = arith.andi %17, %11 : vector<1x256xi1>
    %19 = vector.broadcast %7 : i32 to vector<1x256xi32>
    %20 = arith.addi %9, %19 : vector<1x256xi32>
    %21 = arith.select %18, %20, %9 : vector<1x256xi1>, vector<1x256xi32>
    %c48_i32 = arith.constant 48 : i32
    %22 = vector.broadcast %c48_i32 : i32 to vector<1x256xi32>
    %23 = arith.cmpi sge, %5, %22 : vector<1x256xi32>
    %c32_i32 = arith.constant 32 : i32
    %24 = vector.broadcast %c32_i32 : i32 to vector<1x256xi32>
    %25 = arith.cmpi sge, %5, %24 : vector<1x256xi32>
    %c16_i32_7 = arith.constant 16 : i32
    %26 = vector.broadcast %c16_i32_7 : i32 to vector<1x256xi32>
    %27 = arith.cmpi sge, %5, %26 : vector<1x256xi32>
    %c240_i32 = arith.constant 240 : i32
    %28 = vector.broadcast %c240_i32 : i32 to vector<1x256xi32>
    %29 = arith.cmpi slt, %5, %28 : vector<1x256xi32>
    %c224_i32 = arith.constant 224 : i32
    %30 = vector.broadcast %c224_i32 : i32 to vector<1x256xi32>
    %31 = arith.cmpi slt, %5, %30 : vector<1x256xi32>
    %c208_i32 = arith.constant 208 : i32
    %32 = vector.broadcast %c208_i32 : i32 to vector<1x256xi32>
    %33 = arith.cmpi slt, %5, %32 : vector<1x256xi32>
    %c3_i32 = arith.constant 3 : i32
    %34 = vector.broadcast %c3_i32 : i32 to vector<1x256xi32>
    %35 = arith.cmpi sge, %21, %34 : vector<1x256xi32>
    %c2_i32 = arith.constant 2 : i32
    %36 = vector.broadcast %c2_i32 : i32 to vector<1x256xi32>
    %37 = arith.cmpi sge, %21, %36 : vector<1x256xi32>
    %c1_i32_8 = arith.constant 1 : i32
    %38 = vector.broadcast %c1_i32_8 : i32 to vector<1x256xi32>
    %39 = arith.cmpi sge, %21, %38 : vector<1x256xi32>
    %c15_i32 = arith.constant 15 : i32
    %40 = vector.broadcast %c15_i32 : i32 to vector<1x256xi32>
    %41 = arith.cmpi slt, %21, %40 : vector<1x256xi32>
    %c14_i32 = arith.constant 14 : i32
    %42 = vector.broadcast %c14_i32 : i32 to vector<1x256xi32>
    %43 = arith.cmpi slt, %21, %42 : vector<1x256xi32>
    %c13_i32 = arith.constant 13 : i32
    %44 = vector.broadcast %c13_i32 : i32 to vector<1x256xi32>
    %45 = arith.cmpi slt, %21, %44 : vector<1x256xi32>
    %cst_9 = arith.constant 0.000000e+00 : f32
    %46 = vector.broadcast %cst_9 : f32 to vector<1x256xf32>
    %c3_i32_10 = arith.constant 3 : i32
    %47 = tpu.dynamic_rotate %4 by %c3_i32_10 dim 1 : vector<1x256xf32>, i32 -> vector<1x256xf32>
    %cst_11 = arith.constant 0.000000e+00 : f32
    %48 = vector.broadcast %cst_11 : f32 to vector<1x256xf32>
    %49 = arith.select %35, %47, %48 : vector<1x256xi1>, vector<1x256xf32>
    %c48_i32_12 = arith.constant 48 : i32
    %50 = tpu.dynamic_rotate %49 by %c48_i32_12 dim 1 : vector<1x256xf32>, i32 -> vector<1x256xf32>
    %cst_13 = arith.constant 0.000000e+00 : f32
    %51 = vector.broadcast %cst_13 : f32 to vector<1x256xf32>
    %52 = arith.select %23, %50, %51 : vector<1x256xi1>, vector<1x256xf32>
    %c0_14 = arith.constant 0 : index
    %53 = memref.load %arg1[%c0_14] : memref<98xf32, #tpu.memory_space<smem>>
    %54 = vector.broadcast %53 : f32 to vector<1x256xf32>
    %55 = arith.mulf %54, %52 : vector<1x256xf32>
    %56 = arith.addf %46, %55 : vector<1x256xf32>
    %c32_i32_15 = arith.constant 32 : i32
    %57 = tpu.dynamic_rotate %49 by %c32_i32_15 dim 1 : vector<1x256xf32>, i32 -> vector<1x256xf32>
    %cst_16 = arith.constant 0.000000e+00 : f32
    %58 = vector.broadcast %cst_16 : f32 to vector<1x256xf32>
    %59 = arith.select %25, %57, %58 : vector<1x256xi1>, vector<1x256xf32>
    %c7 = arith.constant 7 : index
    %60 = memref.load %arg1[%c7] : memref<98xf32, #tpu.memory_space<smem>>
    %61 = vector.broadcast %60 : f32 to vector<1x256xf32>
    %62 = arith.mulf %61, %59 : vector<1x256xf32>
    %63 = arith.addf %56, %62 : vector<1x256xf32>
    %c16_i32_17 = arith.constant 16 : i32
    %64 = tpu.dynamic_rotate %49 by %c16_i32_17 dim 1 : vector<1x256xf32>, i32 -> vector<1x256xf32>
    %cst_18 = arith.constant 0.000000e+00 : f32
    %65 = vector.broadcast %cst_18 : f32 to vector<1x256xf32>
    %66 = arith.select %27, %64, %65 : vector<1x256xi1>, vector<1x256xf32>
    %c14 = arith.constant 14 : index
    %67 = memref.load %arg1[%c14] : memref<98xf32, #tpu.memory_space<smem>>
    %68 = vector.broadcast %67 : f32 to vector<1x256xf32>
    %69 = arith.mulf %68, %66 : vector<1x256xf32>
    %70 = arith.addf %63, %69 : vector<1x256xf32>
    %c21 = arith.constant 21 : index
    %71 = memref.load %arg1[%c21] : memref<98xf32, #tpu.memory_space<smem>>
    %72 = vector.broadcast %71 : f32 to vector<1x256xf32>
    %73 = arith.mulf %72, %49 : vector<1x256xf32>
    %74 = arith.addf %70, %73 : vector<1x256xf32>
    %c240_i32_19 = arith.constant 240 : i32
    %75 = tpu.dynamic_rotate %49 by %c240_i32_19 dim 1 : vector<1x256xf32>, i32 -> vector<1x256xf32>
    %cst_20 = arith.constant 0.000000e+00 : f32
    %76 = vector.broadcast %cst_20 : f32 to vector<1x256xf32>
    %77 = arith.select %29, %75, %76 : vector<1x256xi1>, vector<1x256xf32>
    %c28 = arith.constant 28 : index
    %78 = memref.load %arg1[%c28] : memref<98xf32, #tpu.memory_space<smem>>
    %79 = vector.broadcast %78 : f32 to vector<1x256xf32>
    %80 = arith.mulf %79, %77 : vector<1x256xf32>
    %81 = arith.addf %74, %80 : vector<1x256xf32>
    %c224_i32_21 = arith.constant 224 : i32
    %82 = tpu.dynamic_rotate %49 by %c224_i32_21 dim 1 : vector<1x256xf32>, i32 -> vector<1x256xf32>
    %cst_22 = arith.constant 0.000000e+00 : f32
    %83 = vector.broadcast %cst_22 : f32 to vector<1x256xf32>
    %84 = arith.select %31, %82, %83 : vector<1x256xi1>, vector<1x256xf32>
    %c35 = arith.constant 35 : index
    %85 = memref.load %arg1[%c35] : memref<98xf32, #tpu.memory_space<smem>>
    %86 = vector.broadcast %85 : f32 to vector<1x256xf32>
    %87 = arith.mulf %86, %84 : vector<1x256xf32>
    %88 = arith.addf %81, %87 : vector<1x256xf32>
    %c208_i32_23 = arith.constant 208 : i32
    %89 = tpu.dynamic_rotate %49 by %c208_i32_23 dim 1 : vector<1x256xf32>, i32 -> vector<1x256xf32>
    %cst_24 = arith.constant 0.000000e+00 : f32
    %90 = vector.broadcast %cst_24 : f32 to vector<1x256xf32>
    %91 = arith.select %33, %89, %90 : vector<1x256xi1>, vector<1x256xf32>
    %c42 = arith.constant 42 : index
    %92 = memref.load %arg1[%c42] : memref<98xf32, #tpu.memory_space<smem>>
    %93 = vector.broadcast %92 : f32 to vector<1x256xf32>
    %94 = arith.mulf %93, %91 : vector<1x256xf32>
    %95 = arith.addf %88, %94 : vector<1x256xf32>
    %c2_i32_25 = arith.constant 2 : i32
    %96 = tpu.dynamic_rotate %4 by %c2_i32_25 dim 1 : vector<1x256xf32>, i32 -> vector<1x256xf32>
    %cst_26 = arith.constant 0.000000e+00 : f32
    %97 = vector.broadcast %cst_26 : f32 to vector<1x256xf32>
    %98 = arith.select %37, %96, %97 : vector<1x256xi1>, vector<1x256xf32>
    %c48_i32_27 = arith.constant 48 : i32
    %99 = tpu.dynamic_rotate %98 by %c48_i32_27 dim 1 : vector<1x256xf32>, i32 -> vector<1x256xf32>
    %cst_28 = arith.constant 0.000000e+00 : f32
    %100 = vector.broadcast %cst_28 : f32 to vector<1x256xf32>
    %101 = arith.select %23, %99, %100 : vector<1x256xi1>, vector<1x256xf32>
    %c1 = arith.constant 1 : index
    %102 = memref.load %arg1[%c1] : memref<98xf32, #tpu.memory_space<smem>>
    %103 = vector.broadcast %102 : f32 to vector<1x256xf32>
    %104 = arith.mulf %103, %101 : vector<1x256xf32>
    %105 = arith.addf %95, %104 : vector<1x256xf32>
    %c32_i32_29 = arith.constant 32 : i32
    %106 = tpu.dynamic_rotate %98 by %c32_i32_29 dim 1 : vector<1x256xf32>, i32 -> vector<1x256xf32>
    %cst_30 = arith.constant 0.000000e+00 : f32
    %107 = vector.broadcast %cst_30 : f32 to vector<1x256xf32>
    %108 = arith.select %25, %106, %107 : vector<1x256xi1>, vector<1x256xf32>
    %c8 = arith.constant 8 : index
    %109 = memref.load %arg1[%c8] : memref<98xf32, #tpu.memory_space<smem>>
    %110 = vector.broadcast %109 : f32 to vector<1x256xf32>
    %111 = arith.mulf %110, %108 : vector<1x256xf32>
    %112 = arith.addf %105, %111 : vector<1x256xf32>
    %c16_i32_31 = arith.constant 16 : i32
    %113 = tpu.dynamic_rotate %98 by %c16_i32_31 dim 1 : vector<1x256xf32>, i32 -> vector<1x256xf32>
    %cst_32 = arith.constant 0.000000e+00 : f32
    %114 = vector.broadcast %cst_32 : f32 to vector<1x256xf32>
    %115 = arith.select %27, %113, %114 : vector<1x256xi1>, vector<1x256xf32>
    %c15 = arith.constant 15 : index
    %116 = memref.load %arg1[%c15] : memref<98xf32, #tpu.memory_space<smem>>
    %117 = vector.broadcast %116 : f32 to vector<1x256xf32>
    %118 = arith.mulf %117, %115 : vector<1x256xf32>
    %119 = arith.addf %112, %118 : vector<1x256xf32>
    %c22 = arith.constant 22 : index
    %120 = memref.load %arg1[%c22] : memref<98xf32, #tpu.memory_space<smem>>
    %121 = vector.broadcast %120 : f32 to vector<1x256xf32>
    %122 = arith.mulf %121, %98 : vector<1x256xf32>
    %123 = arith.addf %119, %122 : vector<1x256xf32>
    %c240_i32_33 = arith.constant 240 : i32
    %124 = tpu.dynamic_rotate %98 by %c240_i32_33 dim 1 : vector<1x256xf32>, i32 -> vector<1x256xf32>
    %cst_34 = arith.constant 0.000000e+00 : f32
    %125 = vector.broadcast %cst_34 : f32 to vector<1x256xf32>
    %126 = arith.select %29, %124, %125 : vector<1x256xi1>, vector<1x256xf32>
    %c29 = arith.constant 29 : index
    %127 = memref.load %arg1[%c29] : memref<98xf32, #tpu.memory_space<smem>>
    %128 = vector.broadcast %127 : f32 to vector<1x256xf32>
    %129 = arith.mulf %128, %126 : vector<1x256xf32>
    %130 = arith.addf %123, %129 : vector<1x256xf32>
    %c224_i32_35 = arith.constant 224 : i32
    %131 = tpu.dynamic_rotate %98 by %c224_i32_35 dim 1 : vector<1x256xf32>, i32 -> vector<1x256xf32>
    %cst_36 = arith.constant 0.000000e+00 : f32
    %132 = vector.broadcast %cst_36 : f32 to vector<1x256xf32>
    %133 = arith.select %31, %131, %132 : vector<1x256xi1>, vector<1x256xf32>
    %c36 = arith.constant 36 : index
    %134 = memref.load %arg1[%c36] : memref<98xf32, #tpu.memory_space<smem>>
    %135 = vector.broadcast %134 : f32 to vector<1x256xf32>
    %136 = arith.mulf %135, %133 : vector<1x256xf32>
    %137 = arith.addf %130, %136 : vector<1x256xf32>
    %c208_i32_37 = arith.constant 208 : i32
    %138 = tpu.dynamic_rotate %98 by %c208_i32_37 dim 1 : vector<1x256xf32>, i32 -> vector<1x256xf32>
    %cst_38 = arith.constant 0.000000e+00 : f32
    %139 = vector.broadcast %cst_38 : f32 to vector<1x256xf32>
    %140 = arith.select %33, %138, %139 : vector<1x256xi1>, vector<1x256xf32>
    %c43 = arith.constant 43 : index
    %141 = memref.load %arg1[%c43] : memref<98xf32, #tpu.memory_space<smem>>
    %142 = vector.broadcast %141 : f32 to vector<1x256xf32>
    %143 = arith.mulf %142, %140 : vector<1x256xf32>
    %144 = arith.addf %137, %143 : vector<1x256xf32>
    %c1_i32_39 = arith.constant 1 : i32
    %145 = tpu.dynamic_rotate %4 by %c1_i32_39 dim 1 : vector<1x256xf32>, i32 -> vector<1x256xf32>
    %cst_40 = arith.constant 0.000000e+00 : f32
    %146 = vector.broadcast %cst_40 : f32 to vector<1x256xf32>
    %147 = arith.select %39, %145, %146 : vector<1x256xi1>, vector<1x256xf32>
    %c48_i32_41 = arith.constant 48 : i32
    %148 = tpu.dynamic_rotate %147 by %c48_i32_41 dim 1 : vector<1x256xf32>, i32 -> vector<1x256xf32>
    %cst_42 = arith.constant 0.000000e+00 : f32
    %149 = vector.broadcast %cst_42 : f32 to vector<1x256xf32>
    %150 = arith.select %23, %148, %149 : vector<1x256xi1>, vector<1x256xf32>
    %c2 = arith.constant 2 : index
    %151 = memref.load %arg1[%c2] : memref<98xf32, #tpu.memory_space<smem>>
    %152 = vector.broadcast %151 : f32 to vector<1x256xf32>
    %153 = arith.mulf %152, %150 : vector<1x256xf32>
    %154 = arith.addf %144, %153 : vector<1x256xf32>
    %c32_i32_43 = arith.constant 32 : i32
    %155 = tpu.dynamic_rotate %147 by %c32_i32_43 dim 1 : vector<1x256xf32>, i32 -> vector<1x256xf32>
    %cst_44 = arith.constant 0.000000e+00 : f32
    %156 = vector.broadcast %cst_44 : f32 to vector<1x256xf32>
    %157 = arith.select %25, %155, %156 : vector<1x256xi1>, vector<1x256xf32>
    %c9 = arith.constant 9 : index
    %158 = memref.load %arg1[%c9] : memref<98xf32, #tpu.memory_space<smem>>
    %159 = vector.broadcast %158 : f32 to vector<1x256xf32>
    %160 = arith.mulf %159, %157 : vector<1x256xf32>
    %161 = arith.addf %154, %160 : vector<1x256xf32>
    %c16_i32_45 = arith.constant 16 : i32
    %162 = tpu.dynamic_rotate %147 by %c16_i32_45 dim 1 : vector<1x256xf32>, i32 -> vector<1x256xf32>
    %cst_46 = arith.constant 0.000000e+00 : f32
    %163 = vector.broadcast %cst_46 : f32 to vector<1x256xf32>
    %164 = arith.select %27, %162, %163 : vector<1x256xi1>, vector<1x256xf32>
    %c16 = arith.constant 16 : index
    %165 = memref.load %arg1[%c16] : memref<98xf32, #tpu.memory_space<smem>>
    %166 = vector.broadcast %165 : f32 to vector<1x256xf32>
    %167 = arith.mulf %166, %164 : vector<1x256xf32>
    %168 = arith.addf %161, %167 : vector<1x256xf32>
    %c23 = arith.constant 23 : index
    %169 = memref.load %arg1[%c23] : memref<98xf32, #tpu.memory_space<smem>>
    %170 = vector.broadcast %169 : f32 to vector<1x256xf32>
    %171 = arith.mulf %170, %147 : vector<1x256xf32>
    %172 = arith.addf %168, %171 : vector<1x256xf32>
    %c240_i32_47 = arith.constant 240 : i32
    %173 = tpu.dynamic_rotate %147 by %c240_i32_47 dim 1 : vector<1x256xf32>, i32 -> vector<1x256xf32>
    %cst_48 = arith.constant 0.000000e+00 : f32
    %174 = vector.broadcast %cst_48 : f32 to vector<1x256xf32>
    %175 = arith.select %29, %173, %174 : vector<1x256xi1>, vector<1x256xf32>
    %c30 = arith.constant 30 : index
    %176 = memref.load %arg1[%c30] : memref<98xf32, #tpu.memory_space<smem>>
    %177 = vector.broadcast %176 : f32 to vector<1x256xf32>
    %178 = arith.mulf %177, %175 : vector<1x256xf32>
    %179 = arith.addf %172, %178 : vector<1x256xf32>
    %c224_i32_49 = arith.constant 224 : i32
    %180 = tpu.dynamic_rotate %147 by %c224_i32_49 dim 1 : vector<1x256xf32>, i32 -> vector<1x256xf32>
    %cst_50 = arith.constant 0.000000e+00 : f32
    %181 = vector.broadcast %cst_50 : f32 to vector<1x256xf32>
    %182 = arith.select %31, %180, %181 : vector<1x256xi1>, vector<1x256xf32>
    %c37 = arith.constant 37 : index
    %183 = memref.load %arg1[%c37] : memref<98xf32, #tpu.memory_space<smem>>
    %184 = vector.broadcast %183 : f32 to vector<1x256xf32>
    %185 = arith.mulf %184, %182 : vector<1x256xf32>
    %186 = arith.addf %179, %185 : vector<1x256xf32>
    %c208_i32_51 = arith.constant 208 : i32
    %187 = tpu.dynamic_rotate %147 by %c208_i32_51 dim 1 : vector<1x256xf32>, i32 -> vector<1x256xf32>
    %cst_52 = arith.constant 0.000000e+00 : f32
    %188 = vector.broadcast %cst_52 : f32 to vector<1x256xf32>
    %189 = arith.select %33, %187, %188 : vector<1x256xi1>, vector<1x256xf32>
    %c44 = arith.constant 44 : index
    %190 = memref.load %arg1[%c44] : memref<98xf32, #tpu.memory_space<smem>>
    %191 = vector.broadcast %190 : f32 to vector<1x256xf32>
    %192 = arith.mulf %191, %189 : vector<1x256xf32>
    %193 = arith.addf %186, %192 : vector<1x256xf32>
    %c48_i32_53 = arith.constant 48 : i32
    %194 = tpu.dynamic_rotate %4 by %c48_i32_53 dim 1 : vector<1x256xf32>, i32 -> vector<1x256xf32>
    %cst_54 = arith.constant 0.000000e+00 : f32
    %195 = vector.broadcast %cst_54 : f32 to vector<1x256xf32>
    %196 = arith.select %23, %194, %195 : vector<1x256xi1>, vector<1x256xf32>
    %c3 = arith.constant 3 : index
    %197 = memref.load %arg1[%c3] : memref<98xf32, #tpu.memory_space<smem>>
    %198 = vector.broadcast %197 : f32 to vector<1x256xf32>
    %199 = arith.mulf %198, %196 : vector<1x256xf32>
    %200 = arith.addf %193, %199 : vector<1x256xf32>
    %c32_i32_55 = arith.constant 32 : i32
    %201 = tpu.dynamic_rotate %4 by %c32_i32_55 dim 1 : vector<1x256xf32>, i32 -> vector<1x256xf32>
    %cst_56 = arith.constant 0.000000e+00 : f32
    %202 = vector.broadcast %cst_56 : f32 to vector<1x256xf32>
    %203 = arith.select %25, %201, %202 : vector<1x256xi1>, vector<1x256xf32>
    %c10 = arith.constant 10 : index
    %204 = memref.load %arg1[%c10] : memref<98xf32, #tpu.memory_space<smem>>
    %205 = vector.broadcast %204 : f32 to vector<1x256xf32>
    %206 = arith.mulf %205, %203 : vector<1x256xf32>
    %207 = arith.addf %200, %206 : vector<1x256xf32>
    %c16_i32_57 = arith.constant 16 : i32
    %208 = tpu.dynamic_rotate %4 by %c16_i32_57 dim 1 : vector<1x256xf32>, i32 -> vector<1x256xf32>
    %cst_58 = arith.constant 0.000000e+00 : f32
    %209 = vector.broadcast %cst_58 : f32 to vector<1x256xf32>
    %210 = arith.select %27, %208, %209 : vector<1x256xi1>, vector<1x256xf32>
    %c17 = arith.constant 17 : index
    %211 = memref.load %arg1[%c17] : memref<98xf32, #tpu.memory_space<smem>>
    %212 = vector.broadcast %211 : f32 to vector<1x256xf32>
    %213 = arith.mulf %212, %210 : vector<1x256xf32>
    %214 = arith.addf %207, %213 : vector<1x256xf32>
    %c24 = arith.constant 24 : index
    %215 = memref.load %arg1[%c24] : memref<98xf32, #tpu.memory_space<smem>>
    %216 = vector.broadcast %215 : f32 to vector<1x256xf32>
    %217 = arith.mulf %216, %4 : vector<1x256xf32>
    %218 = arith.addf %214, %217 : vector<1x256xf32>
    %c240_i32_59 = arith.constant 240 : i32
    %219 = tpu.dynamic_rotate %4 by %c240_i32_59 dim 1 : vector<1x256xf32>, i32 -> vector<1x256xf32>
    %cst_60 = arith.constant 0.000000e+00 : f32
    %220 = vector.broadcast %cst_60 : f32 to vector<1x256xf32>
    %221 = arith.select %29, %219, %220 : vector<1x256xi1>, vector<1x256xf32>
    %c31 = arith.constant 31 : index
    %222 = memref.load %arg1[%c31] : memref<98xf32, #tpu.memory_space<smem>>
    %223 = vector.broadcast %222 : f32 to vector<1x256xf32>
    %224 = arith.mulf %223, %221 : vector<1x256xf32>
    %225 = arith.addf %218, %224 : vector<1x256xf32>
    %c224_i32_61 = arith.constant 224 : i32
    %226 = tpu.dynamic_rotate %4 by %c224_i32_61 dim 1 : vector<1x256xf32>, i32 -> vector<1x256xf32>
    %cst_62 = arith.constant 0.000000e+00 : f32
    %227 = vector.broadcast %cst_62 : f32 to vector<1x256xf32>
    %228 = arith.select %31, %226, %227 : vector<1x256xi1>, vector<1x256xf32>
    %c38 = arith.constant 38 : index
    %229 = memref.load %arg1[%c38] : memref<98xf32, #tpu.memory_space<smem>>
    %230 = vector.broadcast %229 : f32 to vector<1x256xf32>
    %231 = arith.mulf %230, %228 : vector<1x256xf32>
    %232 = arith.addf %225, %231 : vector<1x256xf32>
    %c208_i32_63 = arith.constant 208 : i32
    %233 = tpu.dynamic_rotate %4 by %c208_i32_63 dim 1 : vector<1x256xf32>, i32 -> vector<1x256xf32>
    %cst_64 = arith.constant 0.000000e+00 : f32
    %234 = vector.broadcast %cst_64 : f32 to vector<1x256xf32>
    %235 = arith.select %33, %233, %234 : vector<1x256xi1>, vector<1x256xf32>
    %c45 = arith.constant 45 : index
    %236 = memref.load %arg1[%c45] : memref<98xf32, #tpu.memory_space<smem>>
    %237 = vector.broadcast %236 : f32 to vector<1x256xf32>
    %238 = arith.mulf %237, %235 : vector<1x256xf32>
    %239 = arith.addf %232, %238 : vector<1x256xf32>
    %c255_i32 = arith.constant 255 : i32
    %240 = tpu.dynamic_rotate %4 by %c255_i32 dim 1 : vector<1x256xf32>, i32 -> vector<1x256xf32>
    %cst_65 = arith.constant 0.000000e+00 : f32
    %241 = vector.broadcast %cst_65 : f32 to vector<1x256xf32>
    %242 = arith.select %41, %240, %241 : vector<1x256xi1>, vector<1x256xf32>
    %c48_i32_66 = arith.constant 48 : i32
    %243 = tpu.dynamic_rotate %242 by %c48_i32_66 dim 1 : vector<1x256xf32>, i32 -> vector<1x256xf32>
    %cst_67 = arith.constant 0.000000e+00 : f32
    %244 = vector.broadcast %cst_67 : f32 to vector<1x256xf32>
    %245 = arith.select %23, %243, %244 : vector<1x256xi1>, vector<1x256xf32>
    %c4 = arith.constant 4 : index
    %246 = memref.load %arg1[%c4] : memref<98xf32, #tpu.memory_space<smem>>
    %247 = vector.broadcast %246 : f32 to vector<1x256xf32>
    %248 = arith.mulf %247, %245 : vector<1x256xf32>
    %249 = arith.addf %239, %248 : vector<1x256xf32>
    %c32_i32_68 = arith.constant 32 : i32
    %250 = tpu.dynamic_rotate %242 by %c32_i32_68 dim 1 : vector<1x256xf32>, i32 -> vector<1x256xf32>
    %cst_69 = arith.constant 0.000000e+00 : f32
    %251 = vector.broadcast %cst_69 : f32 to vector<1x256xf32>
    %252 = arith.select %25, %250, %251 : vector<1x256xi1>, vector<1x256xf32>
    %c11 = arith.constant 11 : index
    %253 = memref.load %arg1[%c11] : memref<98xf32, #tpu.memory_space<smem>>
    %254 = vector.broadcast %253 : f32 to vector<1x256xf32>
    %255 = arith.mulf %254, %252 : vector<1x256xf32>
    %256 = arith.addf %249, %255 : vector<1x256xf32>
    %c16_i32_70 = arith.constant 16 : i32
    %257 = tpu.dynamic_rotate %242 by %c16_i32_70 dim 1 : vector<1x256xf32>, i32 -> vector<1x256xf32>
    %cst_71 = arith.constant 0.000000e+00 : f32
    %258 = vector.broadcast %cst_71 : f32 to vector<1x256xf32>
    %259 = arith.select %27, %257, %258 : vector<1x256xi1>, vector<1x256xf32>
    %c18 = arith.constant 18 : index
    %260 = memref.load %arg1[%c18] : memref<98xf32, #tpu.memory_space<smem>>
    %261 = vector.broadcast %260 : f32 to vector<1x256xf32>
    %262 = arith.mulf %261, %259 : vector<1x256xf32>
    %263 = arith.addf %256, %262 : vector<1x256xf32>
    %c25 = arith.constant 25 : index
    %264 = memref.load %arg1[%c25] : memref<98xf32, #tpu.memory_space<smem>>
    %265 = vector.broadcast %264 : f32 to vector<1x256xf32>
    %266 = arith.mulf %265, %242 : vector<1x256xf32>
    %267 = arith.addf %263, %266 : vector<1x256xf32>
    %c240_i32_72 = arith.constant 240 : i32
    %268 = tpu.dynamic_rotate %242 by %c240_i32_72 dim 1 : vector<1x256xf32>, i32 -> vector<1x256xf32>
    %cst_73 = arith.constant 0.000000e+00 : f32
    %269 = vector.broadcast %cst_73 : f32 to vector<1x256xf32>
    %270 = arith.select %29, %268, %269 : vector<1x256xi1>, vector<1x256xf32>
    %c32 = arith.constant 32 : index
    %271 = memref.load %arg1[%c32] : memref<98xf32, #tpu.memory_space<smem>>
    %272 = vector.broadcast %271 : f32 to vector<1x256xf32>
    %273 = arith.mulf %272, %270 : vector<1x256xf32>
    %274 = arith.addf %267, %273 : vector<1x256xf32>
    %c224_i32_74 = arith.constant 224 : i32
    %275 = tpu.dynamic_rotate %242 by %c224_i32_74 dim 1 : vector<1x256xf32>, i32 -> vector<1x256xf32>
    %cst_75 = arith.constant 0.000000e+00 : f32
    %276 = vector.broadcast %cst_75 : f32 to vector<1x256xf32>
    %277 = arith.select %31, %275, %276 : vector<1x256xi1>, vector<1x256xf32>
    %c39 = arith.constant 39 : index
    %278 = memref.load %arg1[%c39] : memref<98xf32, #tpu.memory_space<smem>>
    %279 = vector.broadcast %278 : f32 to vector<1x256xf32>
    %280 = arith.mulf %279, %277 : vector<1x256xf32>
    %281 = arith.addf %274, %280 : vector<1x256xf32>
    %c208_i32_76 = arith.constant 208 : i32
    %282 = tpu.dynamic_rotate %242 by %c208_i32_76 dim 1 : vector<1x256xf32>, i32 -> vector<1x256xf32>
    %cst_77 = arith.constant 0.000000e+00 : f32
    %283 = vector.broadcast %cst_77 : f32 to vector<1x256xf32>
    %284 = arith.select %33, %282, %283 : vector<1x256xi1>, vector<1x256xf32>
    %c46 = arith.constant 46 : index
    %285 = memref.load %arg1[%c46] : memref<98xf32, #tpu.memory_space<smem>>
    %286 = vector.broadcast %285 : f32 to vector<1x256xf32>
    %287 = arith.mulf %286, %284 : vector<1x256xf32>
    %288 = arith.addf %281, %287 : vector<1x256xf32>
    %c254_i32 = arith.constant 254 : i32
    %289 = tpu.dynamic_rotate %4 by %c254_i32 dim 1 : vector<1x256xf32>, i32 -> vector<1x256xf32>
    %cst_78 = arith.constant 0.000000e+00 : f32
    %290 = vector.broadcast %cst_78 : f32 to vector<1x256xf32>
    %291 = arith.select %43, %289, %290 : vector<1x256xi1>, vector<1x256xf32>
    %c48_i32_79 = arith.constant 48 : i32
    %292 = tpu.dynamic_rotate %291 by %c48_i32_79 dim 1 : vector<1x256xf32>, i32 -> vector<1x256xf32>
    %cst_80 = arith.constant 0.000000e+00 : f32
    %293 = vector.broadcast %cst_80 : f32 to vector<1x256xf32>
    %294 = arith.select %23, %292, %293 : vector<1x256xi1>, vector<1x256xf32>
    %c5 = arith.constant 5 : index
    %295 = memref.load %arg1[%c5] : memref<98xf32, #tpu.memory_space<smem>>
    %296 = vector.broadcast %295 : f32 to vector<1x256xf32>
    %297 = arith.mulf %296, %294 : vector<1x256xf32>
    %298 = arith.addf %288, %297 : vector<1x256xf32>
    %c32_i32_81 = arith.constant 32 : i32
    %299 = tpu.dynamic_rotate %291 by %c32_i32_81 dim 1 : vector<1x256xf32>, i32 -> vector<1x256xf32>
    %cst_82 = arith.constant 0.000000e+00 : f32
    %300 = vector.broadcast %cst_82 : f32 to vector<1x256xf32>
    %301 = arith.select %25, %299, %300 : vector<1x256xi1>, vector<1x256xf32>
    %c12 = arith.constant 12 : index
    %302 = memref.load %arg1[%c12] : memref<98xf32, #tpu.memory_space<smem>>
    %303 = vector.broadcast %302 : f32 to vector<1x256xf32>
    %304 = arith.mulf %303, %301 : vector<1x256xf32>
    %305 = arith.addf %298, %304 : vector<1x256xf32>
    %c16_i32_83 = arith.constant 16 : i32
    %306 = tpu.dynamic_rotate %291 by %c16_i32_83 dim 1 : vector<1x256xf32>, i32 -> vector<1x256xf32>
    %cst_84 = arith.constant 0.000000e+00 : f32
    %307 = vector.broadcast %cst_84 : f32 to vector<1x256xf32>
    %308 = arith.select %27, %306, %307 : vector<1x256xi1>, vector<1x256xf32>
    %c19 = arith.constant 19 : index
    %309 = memref.load %arg1[%c19] : memref<98xf32, #tpu.memory_space<smem>>
    %310 = vector.broadcast %309 : f32 to vector<1x256xf32>
    %311 = arith.mulf %310, %308 : vector<1x256xf32>
    %312 = arith.addf %305, %311 : vector<1x256xf32>
    %c26 = arith.constant 26 : index
    %313 = memref.load %arg1[%c26] : memref<98xf32, #tpu.memory_space<smem>>
    %314 = vector.broadcast %313 : f32 to vector<1x256xf32>
    %315 = arith.mulf %314, %291 : vector<1x256xf32>
    %316 = arith.addf %312, %315 : vector<1x256xf32>
    %c240_i32_85 = arith.constant 240 : i32
    %317 = tpu.dynamic_rotate %291 by %c240_i32_85 dim 1 : vector<1x256xf32>, i32 -> vector<1x256xf32>
    %cst_86 = arith.constant 0.000000e+00 : f32
    %318 = vector.broadcast %cst_86 : f32 to vector<1x256xf32>
    %319 = arith.select %29, %317, %318 : vector<1x256xi1>, vector<1x256xf32>
    %c33 = arith.constant 33 : index
    %320 = memref.load %arg1[%c33] : memref<98xf32, #tpu.memory_space<smem>>
    %321 = vector.broadcast %320 : f32 to vector<1x256xf32>
    %322 = arith.mulf %321, %319 : vector<1x256xf32>
    %323 = arith.addf %316, %322 : vector<1x256xf32>
    %c224_i32_87 = arith.constant 224 : i32
    %324 = tpu.dynamic_rotate %291 by %c224_i32_87 dim 1 : vector<1x256xf32>, i32 -> vector<1x256xf32>
    %cst_88 = arith.constant 0.000000e+00 : f32
    %325 = vector.broadcast %cst_88 : f32 to vector<1x256xf32>
    %326 = arith.select %31, %324, %325 : vector<1x256xi1>, vector<1x256xf32>
    %c40 = arith.constant 40 : index
    %327 = memref.load %arg1[%c40] : memref<98xf32, #tpu.memory_space<smem>>
    %328 = vector.broadcast %327 : f32 to vector<1x256xf32>
    %329 = arith.mulf %328, %326 : vector<1x256xf32>
    %330 = arith.addf %323, %329 : vector<1x256xf32>
    %c208_i32_89 = arith.constant 208 : i32
    %331 = tpu.dynamic_rotate %291 by %c208_i32_89 dim 1 : vector<1x256xf32>, i32 -> vector<1x256xf32>
    %cst_90 = arith.constant 0.000000e+00 : f32
    %332 = vector.broadcast %cst_90 : f32 to vector<1x256xf32>
    %333 = arith.select %33, %331, %332 : vector<1x256xi1>, vector<1x256xf32>
    %c47 = arith.constant 47 : index
    %334 = memref.load %arg1[%c47] : memref<98xf32, #tpu.memory_space<smem>>
    %335 = vector.broadcast %334 : f32 to vector<1x256xf32>
    %336 = arith.mulf %335, %333 : vector<1x256xf32>
    %337 = arith.addf %330, %336 : vector<1x256xf32>
    %c253_i32 = arith.constant 253 : i32
    %338 = tpu.dynamic_rotate %4 by %c253_i32 dim 1 : vector<1x256xf32>, i32 -> vector<1x256xf32>
    %cst_91 = arith.constant 0.000000e+00 : f32
    %339 = vector.broadcast %cst_91 : f32 to vector<1x256xf32>
    %340 = arith.select %45, %338, %339 : vector<1x256xi1>, vector<1x256xf32>
    %c48_i32_92 = arith.constant 48 : i32
    %341 = tpu.dynamic_rotate %340 by %c48_i32_92 dim 1 : vector<1x256xf32>, i32 -> vector<1x256xf32>
    %cst_93 = arith.constant 0.000000e+00 : f32
    %342 = vector.broadcast %cst_93 : f32 to vector<1x256xf32>
    %343 = arith.select %23, %341, %342 : vector<1x256xi1>, vector<1x256xf32>
    %c6 = arith.constant 6 : index
    %344 = memref.load %arg1[%c6] : memref<98xf32, #tpu.memory_space<smem>>
    %345 = vector.broadcast %344 : f32 to vector<1x256xf32>
    %346 = arith.mulf %345, %343 : vector<1x256xf32>
    %347 = arith.addf %337, %346 : vector<1x256xf32>
    %c32_i32_94 = arith.constant 32 : i32
    %348 = tpu.dynamic_rotate %340 by %c32_i32_94 dim 1 : vector<1x256xf32>, i32 -> vector<1x256xf32>
    %cst_95 = arith.constant 0.000000e+00 : f32
    %349 = vector.broadcast %cst_95 : f32 to vector<1x256xf32>
    %350 = arith.select %25, %348, %349 : vector<1x256xi1>, vector<1x256xf32>
    %c13 = arith.constant 13 : index
    %351 = memref.load %arg1[%c13] : memref<98xf32, #tpu.memory_space<smem>>
    %352 = vector.broadcast %351 : f32 to vector<1x256xf32>
    %353 = arith.mulf %352, %350 : vector<1x256xf32>
    %354 = arith.addf %347, %353 : vector<1x256xf32>
    %c16_i32_96 = arith.constant 16 : i32
    %355 = tpu.dynamic_rotate %340 by %c16_i32_96 dim 1 : vector<1x256xf32>, i32 -> vector<1x256xf32>
    %cst_97 = arith.constant 0.000000e+00 : f32
    %356 = vector.broadcast %cst_97 : f32 to vector<1x256xf32>
    %357 = arith.select %27, %355, %356 : vector<1x256xi1>, vector<1x256xf32>
    %c20 = arith.constant 20 : index
    %358 = memref.load %arg1[%c20] : memref<98xf32, #tpu.memory_space<smem>>
    %359 = vector.broadcast %358 : f32 to vector<1x256xf32>
    %360 = arith.mulf %359, %357 : vector<1x256xf32>
    %361 = arith.addf %354, %360 : vector<1x256xf32>
    %c27 = arith.constant 27 : index
    %362 = memref.load %arg1[%c27] : memref<98xf32, #tpu.memory_space<smem>>
    %363 = vector.broadcast %362 : f32 to vector<1x256xf32>
    %364 = arith.mulf %363, %340 : vector<1x256xf32>
    %365 = arith.addf %361, %364 : vector<1x256xf32>
    %c240_i32_98 = arith.constant 240 : i32
    %366 = tpu.dynamic_rotate %340 by %c240_i32_98 dim 1 : vector<1x256xf32>, i32 -> vector<1x256xf32>
    %cst_99 = arith.constant 0.000000e+00 : f32
    %367 = vector.broadcast %cst_99 : f32 to vector<1x256xf32>
    %368 = arith.select %29, %366, %367 : vector<1x256xi1>, vector<1x256xf32>
    %c34 = arith.constant 34 : index
    %369 = memref.load %arg1[%c34] : memref<98xf32, #tpu.memory_space<smem>>
    %370 = vector.broadcast %369 : f32 to vector<1x256xf32>
    %371 = arith.mulf %370, %368 : vector<1x256xf32>
    %372 = arith.addf %365, %371 : vector<1x256xf32>
    %c224_i32_100 = arith.constant 224 : i32
    %373 = tpu.dynamic_rotate %340 by %c224_i32_100 dim 1 : vector<1x256xf32>, i32 -> vector<1x256xf32>
    %cst_101 = arith.constant 0.000000e+00 : f32
    %374 = vector.broadcast %cst_101 : f32 to vector<1x256xf32>
    %375 = arith.select %31, %373, %374 : vector<1x256xi1>, vector<1x256xf32>
    %c41 = arith.constant 41 : index
    %376 = memref.load %arg1[%c41] : memref<98xf32, #tpu.memory_space<smem>>
    %377 = vector.broadcast %376 : f32 to vector<1x256xf32>
    %378 = arith.mulf %377, %375 : vector<1x256xf32>
    %379 = arith.addf %372, %378 : vector<1x256xf32>
    %c208_i32_102 = arith.constant 208 : i32
    %380 = tpu.dynamic_rotate %340 by %c208_i32_102 dim 1 : vector<1x256xf32>, i32 -> vector<1x256xf32>
    %cst_103 = arith.constant 0.000000e+00 : f32
    %381 = vector.broadcast %cst_103 : f32 to vector<1x256xf32>
    %382 = arith.select %33, %380, %381 : vector<1x256xi1>, vector<1x256xf32>
    %c48 = arith.constant 48 : index
    %383 = memref.load %arg1[%c48] : memref<98xf32, #tpu.memory_space<smem>>
    %384 = vector.broadcast %383 : f32 to vector<1x256xf32>
    %385 = arith.mulf %384, %382 : vector<1x256xf32>
    %386 = arith.addf %379, %385 : vector<1x256xf32>
    %c3_i32_104 = arith.constant 3 : i32
    %387 = tpu.dynamic_rotate %2 by %c3_i32_104 dim 1 : vector<1x256xf32>, i32 -> vector<1x256xf32>
    %cst_105 = arith.constant 0.000000e+00 : f32
    %388 = vector.broadcast %cst_105 : f32 to vector<1x256xf32>
    %389 = arith.select %35, %387, %388 : vector<1x256xi1>, vector<1x256xf32>
    %c48_i32_106 = arith.constant 48 : i32
    %390 = tpu.dynamic_rotate %389 by %c48_i32_106 dim 1 : vector<1x256xf32>, i32 -> vector<1x256xf32>
    %cst_107 = arith.constant 0.000000e+00 : f32
    %391 = vector.broadcast %cst_107 : f32 to vector<1x256xf32>
    %392 = arith.select %23, %390, %391 : vector<1x256xi1>, vector<1x256xf32>
    %c49 = arith.constant 49 : index
    %393 = memref.load %arg1[%c49] : memref<98xf32, #tpu.memory_space<smem>>
    %394 = vector.broadcast %393 : f32 to vector<1x256xf32>
    %395 = arith.mulf %394, %392 : vector<1x256xf32>
    %396 = arith.addf %386, %395 : vector<1x256xf32>
    %c32_i32_108 = arith.constant 32 : i32
    %397 = tpu.dynamic_rotate %389 by %c32_i32_108 dim 1 : vector<1x256xf32>, i32 -> vector<1x256xf32>
    %cst_109 = arith.constant 0.000000e+00 : f32
    %398 = vector.broadcast %cst_109 : f32 to vector<1x256xf32>
    %399 = arith.select %25, %397, %398 : vector<1x256xi1>, vector<1x256xf32>
    %c56 = arith.constant 56 : index
    %400 = memref.load %arg1[%c56] : memref<98xf32, #tpu.memory_space<smem>>
    %401 = vector.broadcast %400 : f32 to vector<1x256xf32>
    %402 = arith.mulf %401, %399 : vector<1x256xf32>
    %403 = arith.addf %396, %402 : vector<1x256xf32>
    %c16_i32_110 = arith.constant 16 : i32
    %404 = tpu.dynamic_rotate %389 by %c16_i32_110 dim 1 : vector<1x256xf32>, i32 -> vector<1x256xf32>
    %cst_111 = arith.constant 0.000000e+00 : f32
    %405 = vector.broadcast %cst_111 : f32 to vector<1x256xf32>
    %406 = arith.select %27, %404, %405 : vector<1x256xi1>, vector<1x256xf32>
    %c63 = arith.constant 63 : index
    %407 = memref.load %arg1[%c63] : memref<98xf32, #tpu.memory_space<smem>>
    %408 = vector.broadcast %407 : f32 to vector<1x256xf32>
    %409 = arith.mulf %408, %406 : vector<1x256xf32>
    %410 = arith.addf %403, %409 : vector<1x256xf32>
    %c70 = arith.constant 70 : index
    %411 = memref.load %arg1[%c70] : memref<98xf32, #tpu.memory_space<smem>>
    %412 = vector.broadcast %411 : f32 to vector<1x256xf32>
    %413 = arith.mulf %412, %389 : vector<1x256xf32>
    %414 = arith.addf %410, %413 : vector<1x256xf32>
    %c240_i32_112 = arith.constant 240 : i32
    %415 = tpu.dynamic_rotate %389 by %c240_i32_112 dim 1 : vector<1x256xf32>, i32 -> vector<1x256xf32>
    %cst_113 = arith.constant 0.000000e+00 : f32
    %416 = vector.broadcast %cst_113 : f32 to vector<1x256xf32>
    %417 = arith.select %29, %415, %416 : vector<1x256xi1>, vector<1x256xf32>
    %c77 = arith.constant 77 : index
    %418 = memref.load %arg1[%c77] : memref<98xf32, #tpu.memory_space<smem>>
    %419 = vector.broadcast %418 : f32 to vector<1x256xf32>
    %420 = arith.mulf %419, %417 : vector<1x256xf32>
    %421 = arith.addf %414, %420 : vector<1x256xf32>
    %c224_i32_114 = arith.constant 224 : i32
    %422 = tpu.dynamic_rotate %389 by %c224_i32_114 dim 1 : vector<1x256xf32>, i32 -> vector<1x256xf32>
    %cst_115 = arith.constant 0.000000e+00 : f32
    %423 = vector.broadcast %cst_115 : f32 to vector<1x256xf32>
    %424 = arith.select %31, %422, %423 : vector<1x256xi1>, vector<1x256xf32>
    %c84 = arith.constant 84 : index
    %425 = memref.load %arg1[%c84] : memref<98xf32, #tpu.memory_space<smem>>
    %426 = vector.broadcast %425 : f32 to vector<1x256xf32>
    %427 = arith.mulf %426, %424 : vector<1x256xf32>
    %428 = arith.addf %421, %427 : vector<1x256xf32>
    %c208_i32_116 = arith.constant 208 : i32
    %429 = tpu.dynamic_rotate %389 by %c208_i32_116 dim 1 : vector<1x256xf32>, i32 -> vector<1x256xf32>
    %cst_117 = arith.constant 0.000000e+00 : f32
    %430 = vector.broadcast %cst_117 : f32 to vector<1x256xf32>
    %431 = arith.select %33, %429, %430 : vector<1x256xi1>, vector<1x256xf32>
    %c91 = arith.constant 91 : index
    %432 = memref.load %arg1[%c91] : memref<98xf32, #tpu.memory_space<smem>>
    %433 = vector.broadcast %432 : f32 to vector<1x256xf32>
    %434 = arith.mulf %433, %431 : vector<1x256xf32>
    %435 = arith.addf %428, %434 : vector<1x256xf32>
    %c2_i32_118 = arith.constant 2 : i32
    %436 = tpu.dynamic_rotate %2 by %c2_i32_118 dim 1 : vector<1x256xf32>, i32 -> vector<1x256xf32>
    %cst_119 = arith.constant 0.000000e+00 : f32
    %437 = vector.broadcast %cst_119 : f32 to vector<1x256xf32>
    %438 = arith.select %37, %436, %437 : vector<1x256xi1>, vector<1x256xf32>
    %c48_i32_120 = arith.constant 48 : i32
    %439 = tpu.dynamic_rotate %438 by %c48_i32_120 dim 1 : vector<1x256xf32>, i32 -> vector<1x256xf32>
    %cst_121 = arith.constant 0.000000e+00 : f32
    %440 = vector.broadcast %cst_121 : f32 to vector<1x256xf32>
    %441 = arith.select %23, %439, %440 : vector<1x256xi1>, vector<1x256xf32>
    %c50 = arith.constant 50 : index
    %442 = memref.load %arg1[%c50] : memref<98xf32, #tpu.memory_space<smem>>
    %443 = vector.broadcast %442 : f32 to vector<1x256xf32>
    %444 = arith.mulf %443, %441 : vector<1x256xf32>
    %445 = arith.addf %435, %444 : vector<1x256xf32>
    %c32_i32_122 = arith.constant 32 : i32
    %446 = tpu.dynamic_rotate %438 by %c32_i32_122 dim 1 : vector<1x256xf32>, i32 -> vector<1x256xf32>
    %cst_123 = arith.constant 0.000000e+00 : f32
    %447 = vector.broadcast %cst_123 : f32 to vector<1x256xf32>
    %448 = arith.select %25, %446, %447 : vector<1x256xi1>, vector<1x256xf32>
    %c57 = arith.constant 57 : index
    %449 = memref.load %arg1[%c57] : memref<98xf32, #tpu.memory_space<smem>>
    %450 = vector.broadcast %449 : f32 to vector<1x256xf32>
    %451 = arith.mulf %450, %448 : vector<1x256xf32>
    %452 = arith.addf %445, %451 : vector<1x256xf32>
    %c16_i32_124 = arith.constant 16 : i32
    %453 = tpu.dynamic_rotate %438 by %c16_i32_124 dim 1 : vector<1x256xf32>, i32 -> vector<1x256xf32>
    %cst_125 = arith.constant 0.000000e+00 : f32
    %454 = vector.broadcast %cst_125 : f32 to vector<1x256xf32>
    %455 = arith.select %27, %453, %454 : vector<1x256xi1>, vector<1x256xf32>
    %c64 = arith.constant 64 : index
    %456 = memref.load %arg1[%c64] : memref<98xf32, #tpu.memory_space<smem>>
    %457 = vector.broadcast %456 : f32 to vector<1x256xf32>
    %458 = arith.mulf %457, %455 : vector<1x256xf32>
    %459 = arith.addf %452, %458 : vector<1x256xf32>
    %c71 = arith.constant 71 : index
    %460 = memref.load %arg1[%c71] : memref<98xf32, #tpu.memory_space<smem>>
    %461 = vector.broadcast %460 : f32 to vector<1x256xf32>
    %462 = arith.mulf %461, %438 : vector<1x256xf32>
    %463 = arith.addf %459, %462 : vector<1x256xf32>
    %c240_i32_126 = arith.constant 240 : i32
    %464 = tpu.dynamic_rotate %438 by %c240_i32_126 dim 1 : vector<1x256xf32>, i32 -> vector<1x256xf32>
    %cst_127 = arith.constant 0.000000e+00 : f32
    %465 = vector.broadcast %cst_127 : f32 to vector<1x256xf32>
    %466 = arith.select %29, %464, %465 : vector<1x256xi1>, vector<1x256xf32>
    %c78 = arith.constant 78 : index
    %467 = memref.load %arg1[%c78] : memref<98xf32, #tpu.memory_space<smem>>
    %468 = vector.broadcast %467 : f32 to vector<1x256xf32>
    %469 = arith.mulf %468, %466 : vector<1x256xf32>
    %470 = arith.addf %463, %469 : vector<1x256xf32>
    %c224_i32_128 = arith.constant 224 : i32
    %471 = tpu.dynamic_rotate %438 by %c224_i32_128 dim 1 : vector<1x256xf32>, i32 -> vector<1x256xf32>
    %cst_129 = arith.constant 0.000000e+00 : f32
    %472 = vector.broadcast %cst_129 : f32 to vector<1x256xf32>
    %473 = arith.select %31, %471, %472 : vector<1x256xi1>, vector<1x256xf32>
    %c85 = arith.constant 85 : index
    %474 = memref.load %arg1[%c85] : memref<98xf32, #tpu.memory_space<smem>>
    %475 = vector.broadcast %474 : f32 to vector<1x256xf32>
    %476 = arith.mulf %475, %473 : vector<1x256xf32>
    %477 = arith.addf %470, %476 : vector<1x256xf32>
    %c208_i32_130 = arith.constant 208 : i32
    %478 = tpu.dynamic_rotate %438 by %c208_i32_130 dim 1 : vector<1x256xf32>, i32 -> vector<1x256xf32>
    %cst_131 = arith.constant 0.000000e+00 : f32
    %479 = vector.broadcast %cst_131 : f32 to vector<1x256xf32>
    %480 = arith.select %33, %478, %479 : vector<1x256xi1>, vector<1x256xf32>
    %c92 = arith.constant 92 : index
    %481 = memref.load %arg1[%c92] : memref<98xf32, #tpu.memory_space<smem>>
    %482 = vector.broadcast %481 : f32 to vector<1x256xf32>
    %483 = arith.mulf %482, %480 : vector<1x256xf32>
    %484 = arith.addf %477, %483 : vector<1x256xf32>
    %c1_i32_132 = arith.constant 1 : i32
    %485 = tpu.dynamic_rotate %2 by %c1_i32_132 dim 1 : vector<1x256xf32>, i32 -> vector<1x256xf32>
    %cst_133 = arith.constant 0.000000e+00 : f32
    %486 = vector.broadcast %cst_133 : f32 to vector<1x256xf32>
    %487 = arith.select %39, %485, %486 : vector<1x256xi1>, vector<1x256xf32>
    %c48_i32_134 = arith.constant 48 : i32
    %488 = tpu.dynamic_rotate %487 by %c48_i32_134 dim 1 : vector<1x256xf32>, i32 -> vector<1x256xf32>
    %cst_135 = arith.constant 0.000000e+00 : f32
    %489 = vector.broadcast %cst_135 : f32 to vector<1x256xf32>
    %490 = arith.select %23, %488, %489 : vector<1x256xi1>, vector<1x256xf32>
    %c51 = arith.constant 51 : index
    %491 = memref.load %arg1[%c51] : memref<98xf32, #tpu.memory_space<smem>>
    %492 = vector.broadcast %491 : f32 to vector<1x256xf32>
    %493 = arith.mulf %492, %490 : vector<1x256xf32>
    %494 = arith.addf %484, %493 : vector<1x256xf32>
    %c32_i32_136 = arith.constant 32 : i32
    %495 = tpu.dynamic_rotate %487 by %c32_i32_136 dim 1 : vector<1x256xf32>, i32 -> vector<1x256xf32>
    %cst_137 = arith.constant 0.000000e+00 : f32
    %496 = vector.broadcast %cst_137 : f32 to vector<1x256xf32>
    %497 = arith.select %25, %495, %496 : vector<1x256xi1>, vector<1x256xf32>
    %c58 = arith.constant 58 : index
    %498 = memref.load %arg1[%c58] : memref<98xf32, #tpu.memory_space<smem>>
    %499 = vector.broadcast %498 : f32 to vector<1x256xf32>
    %500 = arith.mulf %499, %497 : vector<1x256xf32>
    %501 = arith.addf %494, %500 : vector<1x256xf32>
    %c16_i32_138 = arith.constant 16 : i32
    %502 = tpu.dynamic_rotate %487 by %c16_i32_138 dim 1 : vector<1x256xf32>, i32 -> vector<1x256xf32>
    %cst_139 = arith.constant 0.000000e+00 : f32
    %503 = vector.broadcast %cst_139 : f32 to vector<1x256xf32>
    %504 = arith.select %27, %502, %503 : vector<1x256xi1>, vector<1x256xf32>
    %c65 = arith.constant 65 : index
    %505 = memref.load %arg1[%c65] : memref<98xf32, #tpu.memory_space<smem>>
    %506 = vector.broadcast %505 : f32 to vector<1x256xf32>
    %507 = arith.mulf %506, %504 : vector<1x256xf32>
    %508 = arith.addf %501, %507 : vector<1x256xf32>
    %c72 = arith.constant 72 : index
    %509 = memref.load %arg1[%c72] : memref<98xf32, #tpu.memory_space<smem>>
    %510 = vector.broadcast %509 : f32 to vector<1x256xf32>
    %511 = arith.mulf %510, %487 : vector<1x256xf32>
    %512 = arith.addf %508, %511 : vector<1x256xf32>
    %c240_i32_140 = arith.constant 240 : i32
    %513 = tpu.dynamic_rotate %487 by %c240_i32_140 dim 1 : vector<1x256xf32>, i32 -> vector<1x256xf32>
    %cst_141 = arith.constant 0.000000e+00 : f32
    %514 = vector.broadcast %cst_141 : f32 to vector<1x256xf32>
    %515 = arith.select %29, %513, %514 : vector<1x256xi1>, vector<1x256xf32>
    %c79 = arith.constant 79 : index
    %516 = memref.load %arg1[%c79] : memref<98xf32, #tpu.memory_space<smem>>
    %517 = vector.broadcast %516 : f32 to vector<1x256xf32>
    %518 = arith.mulf %517, %515 : vector<1x256xf32>
    %519 = arith.addf %512, %518 : vector<1x256xf32>
    %c224_i32_142 = arith.constant 224 : i32
    %520 = tpu.dynamic_rotate %487 by %c224_i32_142 dim 1 : vector<1x256xf32>, i32 -> vector<1x256xf32>
    %cst_143 = arith.constant 0.000000e+00 : f32
    %521 = vector.broadcast %cst_143 : f32 to vector<1x256xf32>
    %522 = arith.select %31, %520, %521 : vector<1x256xi1>, vector<1x256xf32>
    %c86 = arith.constant 86 : index
    %523 = memref.load %arg1[%c86] : memref<98xf32, #tpu.memory_space<smem>>
    %524 = vector.broadcast %523 : f32 to vector<1x256xf32>
    %525 = arith.mulf %524, %522 : vector<1x256xf32>
    %526 = arith.addf %519, %525 : vector<1x256xf32>
    %c208_i32_144 = arith.constant 208 : i32
    %527 = tpu.dynamic_rotate %487 by %c208_i32_144 dim 1 : vector<1x256xf32>, i32 -> vector<1x256xf32>
    %cst_145 = arith.constant 0.000000e+00 : f32
    %528 = vector.broadcast %cst_145 : f32 to vector<1x256xf32>
    %529 = arith.select %33, %527, %528 : vector<1x256xi1>, vector<1x256xf32>
    %c93 = arith.constant 93 : index
    %530 = memref.load %arg1[%c93] : memref<98xf32, #tpu.memory_space<smem>>
    %531 = vector.broadcast %530 : f32 to vector<1x256xf32>
    %532 = arith.mulf %531, %529 : vector<1x256xf32>
    %533 = arith.addf %526, %532 : vector<1x256xf32>
    %c48_i32_146 = arith.constant 48 : i32
    %534 = tpu.dynamic_rotate %2 by %c48_i32_146 dim 1 : vector<1x256xf32>, i32 -> vector<1x256xf32>
    %cst_147 = arith.constant 0.000000e+00 : f32
    %535 = vector.broadcast %cst_147 : f32 to vector<1x256xf32>
    %536 = arith.select %23, %534, %535 : vector<1x256xi1>, vector<1x256xf32>
    %c52 = arith.constant 52 : index
    %537 = memref.load %arg1[%c52] : memref<98xf32, #tpu.memory_space<smem>>
    %538 = vector.broadcast %537 : f32 to vector<1x256xf32>
    %539 = arith.mulf %538, %536 : vector<1x256xf32>
    %540 = arith.addf %533, %539 : vector<1x256xf32>
    %c32_i32_148 = arith.constant 32 : i32
    %541 = tpu.dynamic_rotate %2 by %c32_i32_148 dim 1 : vector<1x256xf32>, i32 -> vector<1x256xf32>
    %cst_149 = arith.constant 0.000000e+00 : f32
    %542 = vector.broadcast %cst_149 : f32 to vector<1x256xf32>
    %543 = arith.select %25, %541, %542 : vector<1x256xi1>, vector<1x256xf32>
    %c59 = arith.constant 59 : index
    %544 = memref.load %arg1[%c59] : memref<98xf32, #tpu.memory_space<smem>>
    %545 = vector.broadcast %544 : f32 to vector<1x256xf32>
    %546 = arith.mulf %545, %543 : vector<1x256xf32>
    %547 = arith.addf %540, %546 : vector<1x256xf32>
    %c16_i32_150 = arith.constant 16 : i32
    %548 = tpu.dynamic_rotate %2 by %c16_i32_150 dim 1 : vector<1x256xf32>, i32 -> vector<1x256xf32>
    %cst_151 = arith.constant 0.000000e+00 : f32
    %549 = vector.broadcast %cst_151 : f32 to vector<1x256xf32>
    %550 = arith.select %27, %548, %549 : vector<1x256xi1>, vector<1x256xf32>
    %c66 = arith.constant 66 : index
    %551 = memref.load %arg1[%c66] : memref<98xf32, #tpu.memory_space<smem>>
    %552 = vector.broadcast %551 : f32 to vector<1x256xf32>
    %553 = arith.mulf %552, %550 : vector<1x256xf32>
    %554 = arith.addf %547, %553 : vector<1x256xf32>
    %c73 = arith.constant 73 : index
    %555 = memref.load %arg1[%c73] : memref<98xf32, #tpu.memory_space<smem>>
    %556 = vector.broadcast %555 : f32 to vector<1x256xf32>
    %557 = arith.mulf %556, %2 : vector<1x256xf32>
    %558 = arith.addf %554, %557 : vector<1x256xf32>
    %c240_i32_152 = arith.constant 240 : i32
    %559 = tpu.dynamic_rotate %2 by %c240_i32_152 dim 1 : vector<1x256xf32>, i32 -> vector<1x256xf32>
    %cst_153 = arith.constant 0.000000e+00 : f32
    %560 = vector.broadcast %cst_153 : f32 to vector<1x256xf32>
    %561 = arith.select %29, %559, %560 : vector<1x256xi1>, vector<1x256xf32>
    %c80 = arith.constant 80 : index
    %562 = memref.load %arg1[%c80] : memref<98xf32, #tpu.memory_space<smem>>
    %563 = vector.broadcast %562 : f32 to vector<1x256xf32>
    %564 = arith.mulf %563, %561 : vector<1x256xf32>
    %565 = arith.addf %558, %564 : vector<1x256xf32>
    %c224_i32_154 = arith.constant 224 : i32
    %566 = tpu.dynamic_rotate %2 by %c224_i32_154 dim 1 : vector<1x256xf32>, i32 -> vector<1x256xf32>
    %cst_155 = arith.constant 0.000000e+00 : f32
    %567 = vector.broadcast %cst_155 : f32 to vector<1x256xf32>
    %568 = arith.select %31, %566, %567 : vector<1x256xi1>, vector<1x256xf32>
    %c87 = arith.constant 87 : index
    %569 = memref.load %arg1[%c87] : memref<98xf32, #tpu.memory_space<smem>>
    %570 = vector.broadcast %569 : f32 to vector<1x256xf32>
    %571 = arith.mulf %570, %568 : vector<1x256xf32>
    %572 = arith.addf %565, %571 : vector<1x256xf32>
    %c208_i32_156 = arith.constant 208 : i32
    %573 = tpu.dynamic_rotate %2 by %c208_i32_156 dim 1 : vector<1x256xf32>, i32 -> vector<1x256xf32>
    %cst_157 = arith.constant 0.000000e+00 : f32
    %574 = vector.broadcast %cst_157 : f32 to vector<1x256xf32>
    %575 = arith.select %33, %573, %574 : vector<1x256xi1>, vector<1x256xf32>
    %c94 = arith.constant 94 : index
    %576 = memref.load %arg1[%c94] : memref<98xf32, #tpu.memory_space<smem>>
    %577 = vector.broadcast %576 : f32 to vector<1x256xf32>
    %578 = arith.mulf %577, %575 : vector<1x256xf32>
    %579 = arith.addf %572, %578 : vector<1x256xf32>
    %c255_i32_158 = arith.constant 255 : i32
    %580 = tpu.dynamic_rotate %2 by %c255_i32_158 dim 1 : vector<1x256xf32>, i32 -> vector<1x256xf32>
    %cst_159 = arith.constant 0.000000e+00 : f32
    %581 = vector.broadcast %cst_159 : f32 to vector<1x256xf32>
    %582 = arith.select %41, %580, %581 : vector<1x256xi1>, vector<1x256xf32>
    %c48_i32_160 = arith.constant 48 : i32
    %583 = tpu.dynamic_rotate %582 by %c48_i32_160 dim 1 : vector<1x256xf32>, i32 -> vector<1x256xf32>
    %cst_161 = arith.constant 0.000000e+00 : f32
    %584 = vector.broadcast %cst_161 : f32 to vector<1x256xf32>
    %585 = arith.select %23, %583, %584 : vector<1x256xi1>, vector<1x256xf32>
    %c53 = arith.constant 53 : index
    %586 = memref.load %arg1[%c53] : memref<98xf32, #tpu.memory_space<smem>>
    %587 = vector.broadcast %586 : f32 to vector<1x256xf32>
    %588 = arith.mulf %587, %585 : vector<1x256xf32>
    %589 = arith.addf %579, %588 : vector<1x256xf32>
    %c32_i32_162 = arith.constant 32 : i32
    %590 = tpu.dynamic_rotate %582 by %c32_i32_162 dim 1 : vector<1x256xf32>, i32 -> vector<1x256xf32>
    %cst_163 = arith.constant 0.000000e+00 : f32
    %591 = vector.broadcast %cst_163 : f32 to vector<1x256xf32>
    %592 = arith.select %25, %590, %591 : vector<1x256xi1>, vector<1x256xf32>
    %c60 = arith.constant 60 : index
    %593 = memref.load %arg1[%c60] : memref<98xf32, #tpu.memory_space<smem>>
    %594 = vector.broadcast %593 : f32 to vector<1x256xf32>
    %595 = arith.mulf %594, %592 : vector<1x256xf32>
    %596 = arith.addf %589, %595 : vector<1x256xf32>
    %c16_i32_164 = arith.constant 16 : i32
    %597 = tpu.dynamic_rotate %582 by %c16_i32_164 dim 1 : vector<1x256xf32>, i32 -> vector<1x256xf32>
    %cst_165 = arith.constant 0.000000e+00 : f32
    %598 = vector.broadcast %cst_165 : f32 to vector<1x256xf32>
    %599 = arith.select %27, %597, %598 : vector<1x256xi1>, vector<1x256xf32>
    %c67 = arith.constant 67 : index
    %600 = memref.load %arg1[%c67] : memref<98xf32, #tpu.memory_space<smem>>
    %601 = vector.broadcast %600 : f32 to vector<1x256xf32>
    %602 = arith.mulf %601, %599 : vector<1x256xf32>
    %603 = arith.addf %596, %602 : vector<1x256xf32>
    %c74 = arith.constant 74 : index
    %604 = memref.load %arg1[%c74] : memref<98xf32, #tpu.memory_space<smem>>
    %605 = vector.broadcast %604 : f32 to vector<1x256xf32>
    %606 = arith.mulf %605, %582 : vector<1x256xf32>
    %607 = arith.addf %603, %606 : vector<1x256xf32>
    %c240_i32_166 = arith.constant 240 : i32
    %608 = tpu.dynamic_rotate %582 by %c240_i32_166 dim 1 : vector<1x256xf32>, i32 -> vector<1x256xf32>
    %cst_167 = arith.constant 0.000000e+00 : f32
    %609 = vector.broadcast %cst_167 : f32 to vector<1x256xf32>
    %610 = arith.select %29, %608, %609 : vector<1x256xi1>, vector<1x256xf32>
    %c81 = arith.constant 81 : index
    %611 = memref.load %arg1[%c81] : memref<98xf32, #tpu.memory_space<smem>>
    %612 = vector.broadcast %611 : f32 to vector<1x256xf32>
    %613 = arith.mulf %612, %610 : vector<1x256xf32>
    %614 = arith.addf %607, %613 : vector<1x256xf32>
    %c224_i32_168 = arith.constant 224 : i32
    %615 = tpu.dynamic_rotate %582 by %c224_i32_168 dim 1 : vector<1x256xf32>, i32 -> vector<1x256xf32>
    %cst_169 = arith.constant 0.000000e+00 : f32
    %616 = vector.broadcast %cst_169 : f32 to vector<1x256xf32>
    %617 = arith.select %31, %615, %616 : vector<1x256xi1>, vector<1x256xf32>
    %c88 = arith.constant 88 : index
    %618 = memref.load %arg1[%c88] : memref<98xf32, #tpu.memory_space<smem>>
    %619 = vector.broadcast %618 : f32 to vector<1x256xf32>
    %620 = arith.mulf %619, %617 : vector<1x256xf32>
    %621 = arith.addf %614, %620 : vector<1x256xf32>
    %c208_i32_170 = arith.constant 208 : i32
    %622 = tpu.dynamic_rotate %582 by %c208_i32_170 dim 1 : vector<1x256xf32>, i32 -> vector<1x256xf32>
    %cst_171 = arith.constant 0.000000e+00 : f32
    %623 = vector.broadcast %cst_171 : f32 to vector<1x256xf32>
    %624 = arith.select %33, %622, %623 : vector<1x256xi1>, vector<1x256xf32>
    %c95 = arith.constant 95 : index
    %625 = memref.load %arg1[%c95] : memref<98xf32, #tpu.memory_space<smem>>
    %626 = vector.broadcast %625 : f32 to vector<1x256xf32>
    %627 = arith.mulf %626, %624 : vector<1x256xf32>
    %628 = arith.addf %621, %627 : vector<1x256xf32>
    %c254_i32_172 = arith.constant 254 : i32
    %629 = tpu.dynamic_rotate %2 by %c254_i32_172 dim 1 : vector<1x256xf32>, i32 -> vector<1x256xf32>
    %cst_173 = arith.constant 0.000000e+00 : f32
    %630 = vector.broadcast %cst_173 : f32 to vector<1x256xf32>
    %631 = arith.select %43, %629, %630 : vector<1x256xi1>, vector<1x256xf32>
    %c48_i32_174 = arith.constant 48 : i32
    %632 = tpu.dynamic_rotate %631 by %c48_i32_174 dim 1 : vector<1x256xf32>, i32 -> vector<1x256xf32>
    %cst_175 = arith.constant 0.000000e+00 : f32
    %633 = vector.broadcast %cst_175 : f32 to vector<1x256xf32>
    %634 = arith.select %23, %632, %633 : vector<1x256xi1>, vector<1x256xf32>
    %c54 = arith.constant 54 : index
    %635 = memref.load %arg1[%c54] : memref<98xf32, #tpu.memory_space<smem>>
    %636 = vector.broadcast %635 : f32 to vector<1x256xf32>
    %637 = arith.mulf %636, %634 : vector<1x256xf32>
    %638 = arith.addf %628, %637 : vector<1x256xf32>
    %c32_i32_176 = arith.constant 32 : i32
    %639 = tpu.dynamic_rotate %631 by %c32_i32_176 dim 1 : vector<1x256xf32>, i32 -> vector<1x256xf32>
    %cst_177 = arith.constant 0.000000e+00 : f32
    %640 = vector.broadcast %cst_177 : f32 to vector<1x256xf32>
    %641 = arith.select %25, %639, %640 : vector<1x256xi1>, vector<1x256xf32>
    %c61 = arith.constant 61 : index
    %642 = memref.load %arg1[%c61] : memref<98xf32, #tpu.memory_space<smem>>
    %643 = vector.broadcast %642 : f32 to vector<1x256xf32>
    %644 = arith.mulf %643, %641 : vector<1x256xf32>
    %645 = arith.addf %638, %644 : vector<1x256xf32>
    %c16_i32_178 = arith.constant 16 : i32
    %646 = tpu.dynamic_rotate %631 by %c16_i32_178 dim 1 : vector<1x256xf32>, i32 -> vector<1x256xf32>
    %cst_179 = arith.constant 0.000000e+00 : f32
    %647 = vector.broadcast %cst_179 : f32 to vector<1x256xf32>
    %648 = arith.select %27, %646, %647 : vector<1x256xi1>, vector<1x256xf32>
    %c68 = arith.constant 68 : index
    %649 = memref.load %arg1[%c68] : memref<98xf32, #tpu.memory_space<smem>>
    %650 = vector.broadcast %649 : f32 to vector<1x256xf32>
    %651 = arith.mulf %650, %648 : vector<1x256xf32>
    %652 = arith.addf %645, %651 : vector<1x256xf32>
    %c75 = arith.constant 75 : index
    %653 = memref.load %arg1[%c75] : memref<98xf32, #tpu.memory_space<smem>>
    %654 = vector.broadcast %653 : f32 to vector<1x256xf32>
    %655 = arith.mulf %654, %631 : vector<1x256xf32>
    %656 = arith.addf %652, %655 : vector<1x256xf32>
    %c240_i32_180 = arith.constant 240 : i32
    %657 = tpu.dynamic_rotate %631 by %c240_i32_180 dim 1 : vector<1x256xf32>, i32 -> vector<1x256xf32>
    %cst_181 = arith.constant 0.000000e+00 : f32
    %658 = vector.broadcast %cst_181 : f32 to vector<1x256xf32>
    %659 = arith.select %29, %657, %658 : vector<1x256xi1>, vector<1x256xf32>
    %c82 = arith.constant 82 : index
    %660 = memref.load %arg1[%c82] : memref<98xf32, #tpu.memory_space<smem>>
    %661 = vector.broadcast %660 : f32 to vector<1x256xf32>
    %662 = arith.mulf %661, %659 : vector<1x256xf32>
    %663 = arith.addf %656, %662 : vector<1x256xf32>
    %c224_i32_182 = arith.constant 224 : i32
    %664 = tpu.dynamic_rotate %631 by %c224_i32_182 dim 1 : vector<1x256xf32>, i32 -> vector<1x256xf32>
    %cst_183 = arith.constant 0.000000e+00 : f32
    %665 = vector.broadcast %cst_183 : f32 to vector<1x256xf32>
    %666 = arith.select %31, %664, %665 : vector<1x256xi1>, vector<1x256xf32>
    %c89 = arith.constant 89 : index
    %667 = memref.load %arg1[%c89] : memref<98xf32, #tpu.memory_space<smem>>
    %668 = vector.broadcast %667 : f32 to vector<1x256xf32>
    %669 = arith.mulf %668, %666 : vector<1x256xf32>
    %670 = arith.addf %663, %669 : vector<1x256xf32>
    %c208_i32_184 = arith.constant 208 : i32
    %671 = tpu.dynamic_rotate %631 by %c208_i32_184 dim 1 : vector<1x256xf32>, i32 -> vector<1x256xf32>
    %cst_185 = arith.constant 0.000000e+00 : f32
    %672 = vector.broadcast %cst_185 : f32 to vector<1x256xf32>
    %673 = arith.select %33, %671, %672 : vector<1x256xi1>, vector<1x256xf32>
    %c96 = arith.constant 96 : index
    %674 = memref.load %arg1[%c96] : memref<98xf32, #tpu.memory_space<smem>>
    %675 = vector.broadcast %674 : f32 to vector<1x256xf32>
    %676 = arith.mulf %675, %673 : vector<1x256xf32>
    %677 = arith.addf %670, %676 : vector<1x256xf32>
    %c253_i32_186 = arith.constant 253 : i32
    %678 = tpu.dynamic_rotate %2 by %c253_i32_186 dim 1 : vector<1x256xf32>, i32 -> vector<1x256xf32>
    %cst_187 = arith.constant 0.000000e+00 : f32
    %679 = vector.broadcast %cst_187 : f32 to vector<1x256xf32>
    %680 = arith.select %45, %678, %679 : vector<1x256xi1>, vector<1x256xf32>
    %c48_i32_188 = arith.constant 48 : i32
    %681 = tpu.dynamic_rotate %680 by %c48_i32_188 dim 1 : vector<1x256xf32>, i32 -> vector<1x256xf32>
    %cst_189 = arith.constant 0.000000e+00 : f32
    %682 = vector.broadcast %cst_189 : f32 to vector<1x256xf32>
    %683 = arith.select %23, %681, %682 : vector<1x256xi1>, vector<1x256xf32>
    %c55 = arith.constant 55 : index
    %684 = memref.load %arg1[%c55] : memref<98xf32, #tpu.memory_space<smem>>
    %685 = vector.broadcast %684 : f32 to vector<1x256xf32>
    %686 = arith.mulf %685, %683 : vector<1x256xf32>
    %687 = arith.addf %677, %686 : vector<1x256xf32>
    %c32_i32_190 = arith.constant 32 : i32
    %688 = tpu.dynamic_rotate %680 by %c32_i32_190 dim 1 : vector<1x256xf32>, i32 -> vector<1x256xf32>
    %cst_191 = arith.constant 0.000000e+00 : f32
    %689 = vector.broadcast %cst_191 : f32 to vector<1x256xf32>
    %690 = arith.select %25, %688, %689 : vector<1x256xi1>, vector<1x256xf32>
    %c62 = arith.constant 62 : index
    %691 = memref.load %arg1[%c62] : memref<98xf32, #tpu.memory_space<smem>>
    %692 = vector.broadcast %691 : f32 to vector<1x256xf32>
    %693 = arith.mulf %692, %690 : vector<1x256xf32>
    %694 = arith.addf %687, %693 : vector<1x256xf32>
    %c16_i32_192 = arith.constant 16 : i32
    %695 = tpu.dynamic_rotate %680 by %c16_i32_192 dim 1 : vector<1x256xf32>, i32 -> vector<1x256xf32>
    %cst_193 = arith.constant 0.000000e+00 : f32
    %696 = vector.broadcast %cst_193 : f32 to vector<1x256xf32>
    %697 = arith.select %27, %695, %696 : vector<1x256xi1>, vector<1x256xf32>
    %c69 = arith.constant 69 : index
    %698 = memref.load %arg1[%c69] : memref<98xf32, #tpu.memory_space<smem>>
    %699 = vector.broadcast %698 : f32 to vector<1x256xf32>
    %700 = arith.mulf %699, %697 : vector<1x256xf32>
    %701 = arith.addf %694, %700 : vector<1x256xf32>
    %c76 = arith.constant 76 : index
    %702 = memref.load %arg1[%c76] : memref<98xf32, #tpu.memory_space<smem>>
    %703 = vector.broadcast %702 : f32 to vector<1x256xf32>
    %704 = arith.mulf %703, %680 : vector<1x256xf32>
    %705 = arith.addf %701, %704 : vector<1x256xf32>
    %c240_i32_194 = arith.constant 240 : i32
    %706 = tpu.dynamic_rotate %680 by %c240_i32_194 dim 1 : vector<1x256xf32>, i32 -> vector<1x256xf32>
    %cst_195 = arith.constant 0.000000e+00 : f32
    %707 = vector.broadcast %cst_195 : f32 to vector<1x256xf32>
    %708 = arith.select %29, %706, %707 : vector<1x256xi1>, vector<1x256xf32>
    %c83 = arith.constant 83 : index
    %709 = memref.load %arg1[%c83] : memref<98xf32, #tpu.memory_space<smem>>
    %710 = vector.broadcast %709 : f32 to vector<1x256xf32>
    %711 = arith.mulf %710, %708 : vector<1x256xf32>
    %712 = arith.addf %705, %711 : vector<1x256xf32>
    %c224_i32_196 = arith.constant 224 : i32
    %713 = tpu.dynamic_rotate %680 by %c224_i32_196 dim 1 : vector<1x256xf32>, i32 -> vector<1x256xf32>
    %cst_197 = arith.constant 0.000000e+00 : f32
    %714 = vector.broadcast %cst_197 : f32 to vector<1x256xf32>
    %715 = arith.select %31, %713, %714 : vector<1x256xi1>, vector<1x256xf32>
    %c90 = arith.constant 90 : index
    %716 = memref.load %arg1[%c90] : memref<98xf32, #tpu.memory_space<smem>>
    %717 = vector.broadcast %716 : f32 to vector<1x256xf32>
    %718 = arith.mulf %717, %715 : vector<1x256xf32>
    %719 = arith.addf %712, %718 : vector<1x256xf32>
    %c208_i32_198 = arith.constant 208 : i32
    %720 = tpu.dynamic_rotate %680 by %c208_i32_198 dim 1 : vector<1x256xf32>, i32 -> vector<1x256xf32>
    %cst_199 = arith.constant 0.000000e+00 : f32
    %721 = vector.broadcast %cst_199 : f32 to vector<1x256xf32>
    %722 = arith.select %33, %720, %721 : vector<1x256xi1>, vector<1x256xf32>
    %c97 = arith.constant 97 : index
    %723 = memref.load %arg1[%c97] : memref<98xf32, #tpu.memory_space<smem>>
    %724 = vector.broadcast %723 : f32 to vector<1x256xf32>
    %725 = arith.mulf %724, %722 : vector<1x256xf32>
    %726 = arith.addf %719, %725 : vector<1x256xf32>
    %727 = arith.negf %726 : vector<1x256xf32>
    %728 = math.exp %727 : vector<1x256xf32>
    %cst_200 = arith.constant 1.000000e+00 : f32
    %729 = vector.broadcast %cst_200 : f32 to vector<1x256xf32>
    %730 = arith.addf %729, %728 : vector<1x256xf32>
    %731 = arith.divf %729, %730 : vector<1x256xf32>
    %c0_201 = arith.constant 0 : index
    %c0_202 = arith.constant 0 : index
    %c0_203 = arith.constant 0 : index
    %732 = vector.load %arg3[%c0_201, %c0_202, %c0_203] : memref<1x1x256xf32, #tpu.memory_space<vmem>>, vector<1x1x256xf32>
    %733 = vector.shape_cast %732 : vector<1x1x256xf32> to vector<1x256xf32>
    %734 = vector.shape_cast %731 : vector<1x256xf32> to vector<1x1x256xf32>
    tpu.vector_store %arg3[%c0_201, %c0_202, %c0_203], %734 {strides = array<i32>} : memref<1x1x256xf32, #tpu.memory_space<vmem>>, vector<1x1x256xf32>,
    return
  }
  func.func @transform_0(%arg0: i32) -> i32 {
    %c0_i32 = arith.constant 0 : i32
    %c0_i32_0 = arith.constant 0 : i32
    return %c0_i32 : i32
  }
  func.func @transform_1(%arg0: i32) -> (i32, i32, i32) {
    %c0_i32 = arith.constant 0 : i32
    %c0_i32_0 = arith.constant 0 : i32
    %c0_i32_1 = arith.constant 0 : i32
    return %arg0, %c0_i32, %c0_i32_0 : i32, i32, i32
  }
  func.func @transform_2(%arg0: i32) -> (i32, i32, i32) {
    %c0_i32 = arith.constant 0 : i32
    %c0_i32_0 = arith.constant 0 : i32
    %c0_i32_1 = arith.constant 0 : i32
    return %arg0, %c0_i32, %c0_i32_0 : i32, i32, i32
  }
}

</mosaic_0001>

<llo_original>
// kernel: _spatial_attention_fwd.1
$region0: #{_spatial_attention_fwd.1}
  #allocation0 [shape = 'u32[]', space=smem, size = 0x4, offset = 0x4, fixed_abs, tag = 'smem constant byte address 0x4 - core index']
  #allocation1 [shape = 'u32[72,128]{1,0:T(1,128)}', space=vmem, size = 0x9000, scoped, tag = 'internal scratch']
  %s0 = inlined_call_operand.vmem [shape: f32[98], index: 0, kind: input, shape index: {}]
  %s1 = inlined_call_operand.vmem [shape: f32[2,64,256], index: 1, kind: input, shape index: {}]
  %s2 = inlined_call_operand.vmem [shape: f32[2,1,256], index: 2, kind: output, shape index: {}]
  %s3 = sld [smem:[#allocation0]]
  $region45: #{_spatial_attention_fwd.1} parent=0
    _
  %s5 = ssub.s32 1, %s3
  %s6 = scalar_select 0, %s5, %s3
  $region1: #{_spatial_attention_fwd.1} parent=0
    #allocation2 [shape = 'u8[512]{0}', space=smem, size = 0x200, scoped, tag = 'input window, operand 0, single buffered']
    #allocation3 [shape = 's32[2]{0}', space=sflag, size = 0x8, scoped, tag = 'scoped memory for _spatial_attention_fwd.1']
    %7 = vsyncpa [#allocation3], 0
    loop: start=0, step=1, limit=4
    $region2: #{_spatial_attention_fwd.1} parent=1 // loop_pre_header
      _
    $region3: #{_spatial_attention_fwd.1} parent=1 // loop_header
      %s9 = sphi 0, %s13
      %p10 = scmp.ge.s32.totalorder %s9, 4
      %s17 = sphi 0, %s17
      %s19 = sphi 0, %s17
      %s20 = sphi 0, %s19
      %s34 = sphi 0, %s20
      %s40 = sphi 0, %s42
      %s43 = sphi 0, %s40
      %s44 = sphi 0, %s43
      %s60 = sphi 0, %s44
      %s66 = sphi 0, %s68
      %s69 = sphi 0, %s66
      %s70 = sphi 0, %s69
      %s86 = sphi 0, %s70
    $region4: #{_spatial_attention_fwd.1} parent=1 // loop_header_branch
      %12 = sbr.rel (%p10) target = $region8
    $region5: #{_spatial_attention_fwd.1} parent=1 // loop_body
      %s14 = ssub.s32 %s9, 1
      %s15 = ssub.s32 %s9, 2
      %s16 = sadd.s32 %s9, 1
      %s18 = sadd.s32 %s17, 1
      %p21 = scmp.eq.s32.totalorder %s9, 1
      %p22 = scmp.ne.s32.totalorder %s17, %s19
      %p23 = scmp.eq.s32.totalorder %s9, 0
      %p24 = por %p22, %p23
      %p25 = scmp.ne.s32.totalorder %s17, %s19
      %p26 = scmp.eq.s32.totalorder %s14, 1
      %p27 = por %p25, %p26
      %p28 = scmp.ne.s32.totalorder %s19, %s20
      %p29 = scmp.eq.s32.totalorder %s14, 0
      %p30 = por %p28, %p29
      %p31 = scmp.ne.s32.totalorder %s19, %s20
      %p32 = scmp.eq.s32.totalorder %s15, 1
      %p33 = por %p31, %p32
      %p35 = scmp.ne.s32.totalorder %s20, %s34
      %p36 = scmp.eq.s32.totalorder %s15, 0
      %p37 = por %p35, %p36
      %s38 = ssub.s32 %s9, %s16
      %p39 = scmp.eq.s32.totalorder %s38, 0
      %s41 = sadd.s32 %s40, 1
      %s42 = scalar_select %p39, %s40, %s41
      %p45 = pneg %p39
      %p46 = scmp.eq.s32.totalorder %s9, 1
      %p47 = por %p45, %p46
      %p48 = scmp.ne.s32.totalorder %s40, %s43
      %p49 = scmp.eq.s32.totalorder %s9, 0
      %p50 = por %p48, %p49
      %p51 = scmp.ne.s32.totalorder %s40, %s43
      %p52 = scmp.eq.s32.totalorder %s14, 1
      %p53 = por %p51, %p52
      %p54 = scmp.ne.s32.totalorder %s43, %s44
      %p55 = scmp.eq.s32.totalorder %s14, 0
      %p56 = por %p54, %p55
      %p57 = scmp.ne.s32.totalorder %s43, %s44
      %p58 = scmp.eq.s32.totalorder %s15, 1
      %p59 = por %p57, %p58
      %p61 = scmp.ne.s32.totalorder %s44, %s60
      %p62 = scmp.eq.s32.totalorder %s15, 0
      %p63 = por %p61, %p62
      %s64 = ssub.s32 %s9, %s16
      %p65 = scmp.eq.s32.totalorder %s64, 0
      %s67 = sadd.s32 %s66, 1
      %s68 = scalar_select %p65, %s66, %s67
      %p71 = pneg %p65
      %p72 = scmp.eq.s32.totalorder %s9, 1
      %p73 = por %p71, %p72
      %p74 = scmp.ne.s32.totalorder %s66, %s69
      %p75 = scmp.eq.s32.totalorder %s9, 0
      %p76 = por %p74, %p75
      %p77 = scmp.ne.s32.totalorder %s66, %s69
      %p78 = scmp.eq.s32.totalorder %s14, 1
      %p79 = por %p77, %p78
      %p80 = scmp.ne.s32.totalorder %s69, %s70
      %p81 = scmp.eq.s32.totalorder %s14, 0
      %p82 = por %p80, %p81
      %p83 = scmp.ne.s32.totalorder %s69, %s70
      %p84 = scmp.eq.s32.totalorder %s15, 1
      %p85 = por %p83, %p84
      %p87 = scmp.ne.s32.totalorder %s70, %s86
      %p88 = scmp.eq.s32.totalorder %s15, 0
      %p89 = por %p87, %p88
      %p90 = scmp.le.s32.totalorder 1, %s9
      %p91 = scmp.lt.s32.totalorder %s9, 3
      %p92 = pnand %p90, %p91
      %p93 = pneg %p92
      // Predicated region
      $region9: #{_spatial_attention_fwd.1} parent=5 // pred_check
        _
      $region10: #{_spatial_attention_fwd.1} parent=5 // pred_check_branch
        %95 = sbr.rel (%p92) target = $region12
      $region11: #{_spatial_attention_fwd.1} parent=5 // pred_region
        %s96 = ssub.s32 %s9, 1
        // Predicated region
        $region13: #{_spatial_attention_fwd.1} parent=11 // pred_check
          %p97 = pneg %p30
        $region14: #{_spatial_attention_fwd.1} parent=11 // pred_check_branch
          %99 = sbr.rel (%p97) target = $region16
        $region15: #{_spatial_attention_fwd.1} parent=11 // pred_region
          %101 = vsyncadd [#allocation3], 0
          %s103 = sshll.u32 %s0, 4
          %s104 = int_to_ptr.vmem [resolvable:$true] %s103
          %106 = dma.vmem_to_smem %s104, 16, [#allocation2], [#allocation3]
        $region16: #{_spatial_attention_fwd.1} parent=11 // pred_fallthru
          _
      $region12: #{_spatial_attention_fwd.1} parent=5 // pred_fallthru
        _
      %p107 = scmp.lt.s32.totalorder %s9, 2
      // Predicated region
      $region17: #{_spatial_attention_fwd.1} parent=5 // pred_check
        %p108 = pneg %p107
      $region18: #{_spatial_attention_fwd.1} parent=5 // pred_check_branch
        %110 = sbr.rel (%p108) target = $region20
      $region19: #{_spatial_attention_fwd.1} parent=5 // pred_region
        // Predicated region
        $region21: #{_spatial_attention_fwd.1} parent=19 // pred_check
          %p111 = pneg %p50
        $region22: #{_spatial_attention_fwd.1} parent=19 // pred_check_branch
          %113 = sbr.rel (%p111) target = $region24
        $region23: #{_spatial_attention_fwd.1} parent=19 // pred_region
          %p114 = scmp.lt.s32.totalorder %s9, 1
          %s115 = scalar_select %p114, %s9, 1
          %s116 = smul.addr %s115, 16
          %s117 = smul.addr %s116, 8
          %s118 = scalar_lea.vmem %s1, %s117
        $region24: #{_spatial_attention_fwd.1} parent=19 // pred_fallthru
          _
      $region20: #{_spatial_attention_fwd.1} parent=5 // pred_fallthru
        _
      %p119 = scmp.le.s32.totalorder 1, %s9
      %p120 = scmp.lt.s32.totalorder %s9, 3
      %p121 = pnand %p119, %p120
      %p122 = pneg %p121
      // Predicated region
      $region25: #{_spatial_attention_fwd.1} parent=5 // pred_check
        _
      $region26: #{_spatial_attention_fwd.1} parent=5 // pred_check_branch
        %124 = sbr.rel (%p121) target = $region28
      $region27: #{_spatial_attention_fwd.1} parent=5 // pred_region
        %s125 = ssub.s32 %s9, 1
        // Predicated region
        $region29: #{_spatial_attention_fwd.1} parent=27 // pred_check
          %p126 = pneg %p30
        $region30: #{_spatial_attention_fwd.1} parent=27 // pred_check_branch
          %128 = sbr.rel (%p126) target = $region32
        $region31: #{_spatial_attention_fwd.1} parent=27 // pred_region
          %130 = dma.done [#allocation3], 16
        $region32: #{_spatial_attention_fwd.1} parent=27 // pred_fallthru
          _
        %131 = sfence
        %p132 = pneg %p30
        %p133 = pneg %p27
        %p134 = scmp.lt.s32.totalorder %s14, 1
        %s135 = scalar_select %p134, %s14, 1
        %s136 = smul.addr %s135, 16
        %s137 = smul.addr %s136, 8
        %s138 = scalar_lea.vmem %s1, %s137
        %p139 = pneg %p56
        %p140 = pneg %p53
        %p141 = pneg %p82
        %p142 = pneg %p79
        %p143 = scmp.lt.s32.totalorder %s14, 1
        %s144 = scalar_select %p143, %s14, 1
        %s145 = smul.addr %s144, 2
        %s146 = scalar_lea.vmem %s2, %s145
        %p147 = scmp.lt.s32.totalorder %s14, 1
        %s148 = scalar_select %p147, %s14, 1
        %s149 = smul.addr %s148, 16
        %s150 = smul.addr %s149, 8
        %s151 = scalar_lea.vmem %s1, %s150
        %p152 = scmp.lt.s32.totalorder %s14, 1
        %s153 = scalar_select %p152, %s14, 1
        %s154 = smul.addr %s153, 2
        %s155 = scalar_lea.vmem %s2, %s154
        %v156 = vld [vmem:[%s151] sm:$0xff]
        %v157 = vld [vmem:[%s151 + $0x8] sm:$0xff]
        %v158 = vld [vmem:[%s151 + $0x10] sm:$0xff]
        %v159 = vld [vmem:[%s151 + $0x18] sm:$0xff]
        %v160 = vld [vmem:[%s151 + $0x20] sm:$0xff]
        %v161 = vld [vmem:[%s151 + $0x28] sm:$0xff]
        %v162 = vld [vmem:[%s151 + $0x30] sm:$0xff]
        %v163 = vld [vmem:[%s151 + $0x38] sm:$0xff]
        %v164 = vld [vmem:[%s151 + $0x40] sm:$0xff]
        %v165 = vld [vmem:[%s151 + $0x48] sm:$0xff]
        %v166 = vld [vmem:[%s151 + $0x50] sm:$0xff]
        %v167 = vld [vmem:[%s151 + $0x58] sm:$0xff]
        %v168 = vld [vmem:[%s151 + $0x60] sm:$0xff]
        %v169 = vld [vmem:[%s151 + $0x68] sm:$0xff]
        %v170 = vld [vmem:[%s151 + $0x70] sm:$0xff]
        %v171 = vld [vmem:[%s151 + $0x78] sm:$0xff]
        %v172 = vadd.f32 %v156, %v158
        %v173 = vadd.f32 %v172, %v160
        %v174 = vadd.f32 %v173, %v162
        %v175 = vadd.f32 %v174, %v164
        %v176 = vadd.f32 %v175, %v166
        %v177 = vadd.f32 %v176, %v168
        %v178 = vadd.f32 %v177, %v170
        %v179 = vrot.slane %v178, 4
        %v180 = vadd.f32 %v178, %v179
        %v181 = vrot.slane %v180, 2
        %v182 = vadd.f32 %v180, %v181
        %v183 = vrot.slane %v182, 1
        %v184 = vadd.f32 %v182, %v183
        %v185 = vadd.f32 %v157, %v159
        %v186 = vadd.f32 %v185, %v161
        %v187 = vadd.f32 %v186, %v163
        %v188 = vadd.f32 %v187, %v165
        %v189 = vadd.f32 %v188, %v167
        %v190 = vadd.f32 %v189, %v169
        %v191 = vadd.f32 %v190, %v171
        %v192 = vrot.slane %v191, 4
        %v193 = vadd.f32 %v191, %v192
        %v194 = vrot.slane %v193, 2
        %v195 = vadd.f32 %v193, %v194
        %v196 = vrot.slane %v195, 1
        %v197 = vadd.f32 %v195, %v196
        %v198 = vmax.f32 %v156, %v160
        %v199 = vmax.f32 %v158, %v162
        %v200 = vmax.f32 %v198, %v164
        %v201 = vmax.f32 %v199, %v166
        %v202 = vmax.f32 %v200, %v168
        %v203 = vmax.f32 %v201, %v170
        %v204 = vmax.f32 %v202, %v203
        %v205 = vrot.slane %v204, 4
        %v206 = vmax.f32 %v204, %v205
        %v207 = vrot.slane %v206, 2
        %v208 = vmax.f32 %v206, %v207
        %v209 = vrot.slane %v208, 1
        %v210 = vmax.f32 %v208, %v209
        %v211 = vmax.f32 %v157, %v161
        %v212 = vmax.f32 %v159, %v163
        %v213 = vmax.f32 %v211, %v165
        %v214 = vmax.f32 %v212, %v167
        %v215 = vmax.f32 %v213, %v169
        %v216 = vmax.f32 %v214, %v171
        %v217 = vmax.f32 %v215, %v216
        %v218 = vrot.slane %v217, 4
        %v219 = vmax.f32 %v217, %v218
        %v220 = vrot.slane %v219, 2
        %v221 = vmax.f32 %v219, %v220
        %v222 = vrot.slane %v221, 1
        %v223 = vmax.f32 %v221, %v222
        %v224 = vmul.f32 %v184, 0.015625
        %v225 = vmul.f32 %v197, 0.015625
        %v226 = vlaneseq
        %v227 = vand.u32 %v226, 127
        %v228 = vadd.s32 %v227, 128
        %vm229 = vcmp.lt.s32.totalorder %v227, 0
        %v230 = vsub.s32 0, %v227
        %v231 = vsel %vm229, %v230, %v227
        %v232 = vshrl.u32 %v231, 4
        %v233 = vand.u32 %v231, 15
        %v234 = vsub.s32 0, %v233
        %v235 = vsel %vm229, %v234, %v233
        %vm236 = vcmp.lt.s32.totalorder %v228, 0
        %v237 = vsub.s32 0, %v228
        %v238 = vsel %vm236, %v237, %v228
        %v239 = vshrl.u32 %v238, 4
        %v240 = vand.u32 %v238, 15
        %v241 = vsub.s32 0, %v240
        %v242 = vsel %vm236, %v241, %v240
        %vm243 = vcmp.ne.s32.totalorder %v235, 0
        %vm244 = vcmp.ne.s32.totalorder %v242, 0
        %vm245 = vcmp.lt.s32.totalorder %v235, 0
        %vm246 = vcmp.lt.s32.totalorder %v242, 0
        %vm247 = vmand %vm245, %vm243
        %vm248 = vmand %vm246, %vm244
        %v249 = vadd.s32 %v235, 16
        %v250 = vadd.s32 %v242, 16
        %v251 = vsel %vm247, %v249, %v235
        %v252 = vsel %vm248, %v250, %v242
        %vm253 = vcmp.ge.s32.totalorder %v227, 48
        %vm254 = vcmp.ge.s32.totalorder %v228, 48
        %vm255 = vcmp.ge.s32.totalorder %v227, 32
        %vm256 = vcmp.ge.s32.totalorder %v228, 32
        %vm257 = vcmp.ge.s32.totalorder %v227, 16
        %vm258 = vcmp.ge.s32.totalorder %v228, 16
        %vm259 = vcmp.lt.s32.totalorder %v227, 240
        %vm260 = vcmp.lt.s32.totalorder %v228, 240
        %vm261 = vcmp.lt.s32.totalorder %v227, 224
        %vm262 = vcmp.lt.s32.totalorder %v228, 224
        %vm263 = vcmp.lt.s32.totalorder %v227, 208
        %vm264 = vcmp.lt.s32.totalorder %v228, 208
        %vm265 = vcmp.ge.s32.totalorder %v251, 3
        %vm266 = vcmp.ge.s32.totalorder %v252, 3
        %vm267 = vcmp.ge.s32.totalorder %v251, 2
        %vm268 = vcmp.ge.s32.totalorder %v252, 2
        %vm269 = vcmp.ge.s32.totalorder %v251, 1
        %vm270 = vcmp.ge.s32.totalorder %v252, 1
        %vm271 = vcmp.lt.s32.totalorder %v251, 15
        %vm272 = vcmp.lt.s32.totalorder %v252, 15
        %vm273 = vcmp.lt.s32.totalorder %v251, 14
        %vm274 = vcmp.lt.s32.totalorder %v252, 14
        %vm275 = vcmp.lt.s32.totalorder %v251, 13
        %vm276 = vcmp.lt.s32.totalorder %v252, 13
        %277 = vrot.lane.b32.xlu0 %v224, 3
        %v278 = vpop.permute.xlu0 %277
        %279 = vrot.lane.b32.xlu0 %v225, 3
        %v280 = vpop.permute.xlu0 %279
        %vm281 = vcmp.lt.s32.totalorder %v227, 3
        %v282 = vsel %vm281, %v278, %v280
        %v283 = vsel %vm281, %v280, %v278
        %v284 = vsel %vm265, %v283, 0.0
        %v285 = vsel %vm266, %v282, 0.0
        %286 = vrot.lane.b32.xlu0 %v284, 48
        %v287 = vpop.permute.xlu0 %286
        %288 = vrot.lane.b32.xlu0 %v285, 48
        %v289 = vpop.permute.xlu0 %288
        %vm290 = vcmp.lt.s32.totalorder %v227, 48
        %v291 = vsel %vm290, %v287, %v289
        %v292 = vsel %vm290, %v289, %v287
        %v293 = vsel %vm253, %v292, 0.0
        %v294 = vsel %vm254, %v291, 0.0
        %s295 = sld [smem:[#allocation2]]
        %v296 = vstv %s295
        %v297 = vmul.f32 %v296, %v293
        %v298 = vmul.f32 %v296, %v294
        %v299 = vadd.f32 %v297, 0.0
        %v300 = vadd.f32 %v298, 0.0
        %301 = vrot.lane.b32.xlu0 %v284, 32
        %v302 = vpop.permute.xlu0 %301
        %303 = vrot.lane.b32.xlu0 %v285, 32
        %v304 = vpop.permute.xlu0 %303
        %vm305 = vcmp.lt.s32.totalorder %v227, 32
        %v306 = vsel %vm305, %v302, %v304
        %v307 = vsel %vm305, %v304, %v302
        %v308 = vsel %vm255, %v307, 0.0
        %v309 = vsel %vm256, %v306, 0.0
        %s310 = sld [smem:[#allocation2 + $0x7]]
        %v311 = vstv %s310
        %v312 = vmul.f32 %v311, %v308
        %v313 = vmul.f32 %v311, %v309
        %v314 = vadd.f32 %v299, %v312
        %v315 = vadd.f32 %v300, %v313
        %316 = vrot.lane.b32.xlu0 %v284, 16
        %v317 = vpop.permute.xlu0 %316
        %318 = vrot.lane.b32.xlu0 %v285, 16
        %v319 = vpop.permute.xlu0 %318
        %vm320 = vcmp.lt.s32.totalorder %v227, 16
        %v321 = vsel %vm320, %v317, %v319
        %v322 = vsel %vm320, %v319, %v317
        %v323 = vsel %vm257, %v322, 0.0
        %v324 = vsel %vm258, %v321, 0.0
        %s325 = sld [smem:[#allocation2 + $0xe]]
        %v326 = vstv %s325
        %v327 = vmul.f32 %v326, %v323
        %v328 = vmul.f32 %v326, %v324
        %v329 = vadd.f32 %v314, %v327
        %v330 = vadd.f32 %v315, %v328
        %s331 = sld [smem:[#allocation2 + $0x15]]
        %v332 = vstv %s331
        %v333 = vmul.f32 %v332, %v284
        %v334 = vmul.f32 %v332, %v285
        %v335 = vadd.f32 %v329, %v333
        %v336 = vadd.f32 %v330, %v334
        %337 = vrot.lane.b32.xlu0 %v284, 112
        %v338 = vpop.permute.xlu0 %337
        %339 = vrot.lane.b32.xlu0 %v285, 112
        %v340 = vpop.permute.xlu0 %339
        %vm341 = vcmp.lt.s32.totalorder %v227, 112
        %v342 = vsel %vm341, %v338, %v340
        %v343 = vsel %vm341, %v340, %v338
        %v344 = vsel %vm259, %v342, 0.0
        %v345 = vsel %vm260, %v343, 0.0
        %s346 = sld [smem:[#allocation2 + $0x1c]]
        %v347 = vstv %s346
        %v348 = vmul.f32 %v347, %v344
        %v349 = vmul.f32 %v347, %v345
        %v350 = vadd.f32 %v335, %v348
        %v351 = vadd.f32 %v336, %v349
        %352 = vrot.lane.b32.xlu0 %v284, 96
        %v353 = vpop.permute.xlu0 %352
        %354 = vrot.lane.b32.xlu0 %v285, 96
        %v355 = vpop.permute.xlu0 %354
        %vm356 = vcmp.lt.s32.totalorder %v227, 96
        %v357 = vsel %vm356, %v353, %v355
        %v358 = vsel %vm356, %v355, %v353
        %v359 = vsel %vm261, %v357, 0.0
        %v360 = vsel %vm262, %v358, 0.0
        %s361 = sld [smem:[#allocation2 + $0x23]]
        %v362 = vstv %s361
        %v363 = vmul.f32 %v362, %v359
        %v364 = vmul.f32 %v362, %v360
        %v365 = vadd.f32 %v350, %v363
        %v366 = vadd.f32 %v351, %v364
        %367 = vrot.lane.b32.xlu0 %v284, 80
        %v368 = vpop.permute.xlu0 %367
        %369 = vrot.lane.b32.xlu0 %v285, 80
        %v370 = vpop.permute.xlu0 %369
        %vm371 = vcmp.lt.s32.totalorder %v227, 80
        %v372 = vsel %vm371, %v368, %v370
        %v373 = vsel %vm371, %v370, %v368
        %v374 = vsel %vm263, %v372, 0.0
        %v375 = vsel %vm264, %v373, 0.0
        %s376 = sld [smem:[#allocation2 + $0x2a]]
        %v377 = vstv %s376
        %v378 = vmul.f32 %v377, %v374
        %v379 = vmul.f32 %v377, %v375
        %v380 = vadd.f32 %v365, %v378
        %v381 = vadd.f32 %v366, %v379
        %382 = vrot.lane.b32.xlu0 %v224, 2
        %v383 = vpop.permute.xlu0 %382
        %384 = vrot.lane.b32.xlu0 %v225, 2
        %v385 = vpop.permute.xlu0 %384
        %vm386 = vcmp.lt.s32.totalorder %v227, 2
        %v387 = vsel %vm386, %v383, %v385
        %v388 = vsel %vm386, %v385, %v383
        %v389 = vsel %vm267, %v388, 0.0
        %v390 = vsel %vm268, %v387, 0.0
        %391 = vrot.lane.b32.xlu0 %v389, 48
        %v392 = vpop.permute.xlu0 %391
        %393 = vrot.lane.b32.xlu0 %v390, 48
        %v394 = vpop.permute.xlu0 %393
        %v395 = vsel %vm290, %v392, %v394
        %v396 = vsel %vm290, %v394, %v392
        %v397 = vsel %vm253, %v396, 0.0
        %v398 = vsel %vm254, %v395, 0.0
        %s399 = sld [smem:[#allocation2 + $0x1]]
        %v400 = vstv %s399
        %v401 = vmul.f32 %v400, %v397
        %v402 = vmul.f32 %v400, %v398
        %v403 = vadd.f32 %v380, %v401
        %v404 = vadd.f32 %v381, %v402
        %405 = vrot.lane.b32.xlu0 %v389, 32
        %v406 = vpop.permute.xlu0 %405
        %407 = vrot.lane.b32.xlu0 %v390, 32
        %v408 = vpop.permute.xlu0 %407
        %v409 = vsel %vm305, %v406, %v408
        %v410 = vsel %vm305, %v408, %v406
        %v411 = vsel %vm255, %v410, 0.0
        %v412 = vsel %vm256, %v409, 0.0
        %s413 = sld [smem:[#allocation2 + $0x8]]
        %v414 = vstv %s413
        %v415 = vmul.f32 %v414, %v411
        %v416 = vmul.f32 %v414, %v412
        %v417 = vadd.f32 %v403, %v415
        %v418 = vadd.f32 %v404, %v416
        %419 = vrot.lane.b32.xlu0 %v389, 16
        %v420 = vpop.permute.xlu0 %419
        %421 = vrot.lane.b32.xlu0 %v390, 16
        %v422 = vpop.permute.xlu0 %421
        %v423 = vsel %vm320, %v420, %v422
        %v424 = vsel %vm320, %v422, %v420
        %v425 = vsel %vm257, %v424, 0.0
        %v426 = vsel %vm258, %v423, 0.0
        %s427 = sld [smem:[#allocation2 + $0xf]]
        %v428 = vstv %s427
        %v429 = vmul.f32 %v428, %v425
        %v430 = vmul.f32 %v428, %v426
        %v431 = vadd.f32 %v417, %v429
        %v432 = vadd.f32 %v418, %v430
        %s433 = sld [smem:[#allocation2 + $0x16]]
        %v434 = vstv %s433
        %v435 = vmul.f32 %v434, %v389
        %v436 = vmul.f32 %v434, %v390
        %v437 = vadd.f32 %v431, %v435
        %v438 = vadd.f32 %v432, %v436
        %439 = vrot.lane.b32.xlu0 %v389, 112
        %v440 = vpop.permute.xlu0 %439
        %441 = vrot.lane.b32.xlu0 %v390, 112
        %v442 = vpop.permute.xlu0 %441
        %v443 = vsel %vm341, %v440, %v442
        %v444 = vsel %vm341, %v442, %v440
        %v445 = vsel %vm259, %v443, 0.0
        %v446 = vsel %vm260, %v444, 0.0
        %s447 = sld [smem:[#allocation2 + $0x1d]]
        %v448 = vstv %s447
        %v449 = vmul.f32 %v448, %v445
        %v450 = vmul.f32 %v448, %v446
        %v451 = vadd.f32 %v437, %v449
        %v452 = vadd.f32 %v438, %v450
        %453 = vrot.lane.b32.xlu0 %v389, 96
        %v454 = vpop.permute.xlu0 %453
        %455 = vrot.lane.b32.xlu0 %v390, 96
        %v456 = vpop.permute.xlu0 %455
        %v457 = vsel %vm356, %v454, %v456
        %v458 = vsel %vm356, %v456, %v454
        %v459 = vsel %vm261, %v457, 0.0
        %v460 = vsel %vm262, %v458, 0.0
        %s461 = sld [smem:[#allocation2 + $0x24]]
        %v462 = vstv %s461
        %v463 = vmul.f32 %v462, %v459
        %v464 = vmul.f32 %v462, %v460
        %v465 = vadd.f32 %v451, %v463
        %v466 = vadd.f32 %v452, %v464
        %467 = vrot.lane.b32.xlu0 %v389, 80
        %v468 = vpop.permute.xlu0 %467
        %469 = vrot.lane.b32.xlu0 %v390, 80
        %v470 = vpop.permute.xlu0 %469
        %v471 = vsel %vm371, %v468, %v470
        %v472 = vsel %vm371, %v470, %v468
        %v473 = vsel %vm263, %v471, 0.0
        %v474 = vsel %vm264, %v472, 0.0
        %s475 = sld [smem:[#allocation2 + $0x2b]]
        %v476 = vstv %s475
        %v477 = vmul.f32 %v476, %v473
        %v478 = vmul.f32 %v476, %v474
        %v479 = vadd.f32 %v465, %v477
        %v480 = vadd.f32 %v466, %v478
        %481 = vrot.lane.b32.xlu0 %v224, 1
        %v482 = vpop.permute.xlu0 %481
        %483 = vrot.lane.b32.xlu0 %v225, 1
        %v484 = vpop.permute.xlu0 %483
        %vm485 = vcmp.lt.s32.totalorder %v227, 1
        %v486 = vsel %vm485, %v482, %v484
        %v487 = vsel %vm485, %v484, %v482
        %v488 = vsel %vm269, %v487, 0.0
        %v489 = vsel %vm270, %v486, 0.0
        %490 = vrot.lane.b32.xlu0 %v488, 48
        %v491 = vpop.permute.xlu0 %490
        %492 = vrot.lane.b32.xlu0 %v489, 48
        %v493 = vpop.permute.xlu0 %492
        %v494 = vsel %vm290, %v491, %v493
        %v495 = vsel %vm290, %v493, %v491
        %v496 = vsel %vm253, %v495, 0.0
        %v497 = vsel %vm254, %v494, 0.0
        %s498 = sld [smem:[#allocation2 + $0x2]]
        %v499 = vstv %s498
        %v500 = vmul.f32 %v499, %v496
        %v501 = vmul.f32 %v499, %v497
        %v502 = vadd.f32 %v479, %v500
        %v503 = vadd.f32 %v480, %v501
        %504 = vrot.lane.b32.xlu0 %v488, 32
        %v505 = vpop.permute.xlu0 %504
        %506 = vrot.lane.b32.xlu0 %v489, 32
        %v507 = vpop.permute.xlu0 %506
        %v508 = vsel %vm305, %v505, %v507
        %v509 = vsel %vm305, %v507, %v505
        %v510 = vsel %vm255, %v509, 0.0
        %v511 = vsel %vm256, %v508, 0.0
        %s512 = sld [smem:[#allocation2 + $0x9]]
        %v513 = vstv %s512
        %v514 = vmul.f32 %v513, %v510
        %v515 = vmul.f32 %v513, %v511
        %v516 = vadd.f32 %v502, %v514
        %v517 = vadd.f32 %v503, %v515
        %518 = vrot.lane.b32.xlu0 %v488, 16
        %v519 = vpop.permute.xlu0 %518
        %520 = vrot.lane.b32.xlu0 %v489, 16
        %v521 = vpop.permute.xlu0 %520
        %v522 = vsel %vm320, %v519, %v521
        %v523 = vsel %vm320, %v521, %v519
        %v524 = vsel %vm257, %v523, 0.0
        %v525 = vsel %vm258, %v522, 0.0
        %s526 = sld [smem:[#allocation2 + $0x10]]
        %v527 = vstv %s526
        %v528 = vmul.f32 %v527, %v524
        %v529 = vmul.f32 %v527, %v525
        %v530 = vadd.f32 %v516, %v528
        %v531 = vadd.f32 %v517, %v529
        %s532 = sld [smem:[#allocation2 + $0x17]]
        %v533 = vstv %s532
        %v534 = vmul.f32 %v533, %v488
        %v535 = vmul.f32 %v533, %v489
        %v536 = vadd.f32 %v530, %v534
        %v537 = vadd.f32 %v531, %v535
        %538 = vrot.lane.b32.xlu0 %v488, 112
        %v539 = vpop.permute.xlu0 %538
        %540 = vrot.lane.b32.xlu0 %v489, 112
        %v541 = vpop.permute.xlu0 %540
        %v542 = vsel %vm341, %v539, %v541
        %v543 = vsel %vm341, %v541, %v539
        %v544 = vsel %vm259, %v542, 0.0
        %v545 = vsel %vm260, %v543, 0.0
        %s546 = sld [smem:[#allocation2 + $0x1e]]
        %v547 = vstv %s546
        %v548 = vmul.f32 %v547, %v544
        %v549 = vmul.f32 %v547, %v545
        %v550 = vadd.f32 %v536, %v548
        %v551 = vadd.f32 %v537, %v549
        %552 = vrot.lane.b32.xlu0 %v488, 96
        %v553 = vpop.permute.xlu0 %552
        %554 = vrot.lane.b32.xlu0 %v489, 96
        %v555 = vpop.permute.xlu0 %554
        %v556 = vsel %vm356, %v553, %v555
        %v557 = vsel %vm356, %v555, %v553
        %v558 = vsel %vm261, %v556, 0.0
        %v559 = vsel %vm262, %v557, 0.0
        %s560 = sld [smem:[#allocation2 + $0x25]]
        %v561 = vstv %s560
        %v562 = vmul.f32 %v561, %v558
        %v563 = vmul.f32 %v561, %v559
        %v564 = vadd.f32 %v550, %v562
        %v565 = vadd.f32 %v551, %v563
        %566 = vrot.lane.b32.xlu0 %v488, 80
        %v567 = vpop.permute.xlu0 %566
        %568 = vrot.lane.b32.xlu0 %v489, 80
        %v569 = vpop.permute.xlu0 %568
        %v570 = vsel %vm371, %v567, %v569
        %v571 = vsel %vm371, %v569, %v567
        %v572 = vsel %vm263, %v570, 0.0
        %v573 = vsel %vm264, %v571, 0.0
        %s574 = sld [smem:[#allocation2 + $0x2c]]
        %v575 = vstv %s574
        %v576 = vmul.f32 %v575, %v572
        %v577 = vmul.f32 %v575, %v573
        %v578 = vadd.f32 %v564, %v576
        %v579 = vadd.f32 %v565, %v577
        %580 = vrot.lane.b32.xlu0 %v224, 48
        %v581 = vpop.permute.xlu0 %580
        %582 = vrot.lane.b32.xlu0 %v225, 48
        %v583 = vpop.permute.xlu0 %582
        %v584 = vsel %vm290, %v581, %v583
        %v585 = vsel %vm290, %v583, %v581
        %v586 = vsel %vm253, %v585, 0.0
        %v587 = vsel %vm254, %v584, 0.0
        %s588 = sld [smem:[#allocation2 + $0x3]]
        %v589 = vstv %s588
        %v590 = vmul.f32 %v589, %v586
        %v591 = vmul.f32 %v589, %v587
        %v592 = vadd.f32 %v578, %v590
        %v593 = vadd.f32 %v579, %v591
        %594 = vrot.lane.b32.xlu0 %v224, 32
        %v595 = vpop.permute.xlu0 %594
        %596 = vrot.lane.b32.xlu0 %v225, 32
        %v597 = vpop.permute.xlu0 %596
        %v598 = vsel %vm305, %v595, %v597
        %v599 = vsel %vm305, %v597, %v595
        %v600 = vsel %vm255, %v599, 0.0
        %v601 = vsel %vm256, %v598, 0.0
        %s602 = sld [smem:[#allocation2 + $0xa]]
        %v603 = vstv %s602
        %v604 = vmul.f32 %v603, %v600
        %v605 = vmul.f32 %v603, %v601
        %v606 = vadd.f32 %v592, %v604
        %v607 = vadd.f32 %v593, %v605
        %608 = vrot.lane.b32.xlu0 %v224, 16
        %v609 = vpop.permute.xlu0 %608
        %610 = vrot.lane.b32.xlu0 %v225, 16
        %v611 = vpop.permute.xlu0 %610
        %v612 = vsel %vm320, %v609, %v611
        %v613 = vsel %vm320, %v611, %v609
        %v614 = vsel %vm257, %v613, 0.0
        %v615 = vsel %vm258, %v612, 0.0
        %s616 = sld [smem:[#allocation2 + $0x11]]
        %v617 = vstv %s616
        %v618 = vmul.f32 %v617, %v614
        %v619 = vmul.f32 %v617, %v615
        %v620 = vadd.f32 %v606, %v618
        %v621 = vadd.f32 %v607, %v619
        %s622 = sld [smem:[#allocation2 + $0x18]]
        %v623 = vstv %s622
        %v624 = vmul.f32 %v623, %v224
        %v625 = vmul.f32 %v623, %v225
        %v626 = vadd.f32 %v620, %v624
        %v627 = vadd.f32 %v621, %v625
        %628 = vrot.lane.b32.xlu0 %v224, 112
        %v629 = vpop.permute.xlu0 %628
        %630 = vrot.lane.b32.xlu0 %v225, 112
        %v631 = vpop.permute.xlu0 %630
        %v632 = vsel %vm341, %v629, %v631
        %v633 = vsel %vm341, %v631, %v629
        %v634 = vsel %vm259, %v632, 0.0
        %v635 = vsel %vm260, %v633, 0.0
        %s636 = sld [smem:[#allocation2 + $0x1f]]
        %v637 = vstv %s636
        %v638 = vmul.f32 %v637, %v634
        %v639 = vmul.f32 %v637, %v635
        %v640 = vadd.f32 %v626, %v638
        %v641 = vadd.f32 %v627, %v639
        %642 = vrot.lane.b32.xlu0 %v224, 96
        %v643 = vpop.permute.xlu0 %642
        %644 = vrot.lane.b32.xlu0 %v225, 96
        %v645 = vpop.permute.xlu0 %644
        %v646 = vsel %vm356, %v643, %v645
        %v647 = vsel %vm356, %v645, %v643
        %v648 = vsel %vm261, %v646, 0.0
        %v649 = vsel %vm262, %v647, 0.0
        %s650 = sld [smem:[#allocation2 + $0x26]]
        %v651 = vstv %s650
        %v652 = vmul.f32 %v651, %v648
        %v653 = vmul.f32 %v651, %v649
        %v654 = vadd.f32 %v640, %v652
        %v655 = vadd.f32 %v641, %v653
        %656 = vrot.lane.b32.xlu0 %v224, 80
        %v657 = vpop.permute.xlu0 %656
        %658 = vrot.lane.b32.xlu0 %v225, 80
        %v659 = vpop.permute.xlu0 %658
        %v660 = vsel %vm371, %v657, %v659
        %v661 = vsel %vm371, %v659, %v657
        %v662 = vsel %vm263, %v660, 0.0
        %v663 = vsel %vm264, %v661, 0.0
        %s664 = sld [smem:[#allocation2 + $0x2d]]
        %v665 = vstv %s664
        %v666 = vmul.f32 %v665, %v662
        %v667 = vmul.f32 %v665, %v663
        %v668 = vadd.f32 %v654, %v666
        %v669 = vadd.f32 %v655, %v667
        %670 = vrot.lane.b32.xlu0 %v224, 127
        %v671 = vpop.permute.xlu0 %670
        %672 = vrot.lane.b32.xlu0 %v225, 127
        %v673 = vpop.permute.xlu0 %672
        %vm674 = vcmp.lt.s32.totalorder %v227, 127
        %v675 = vsel %vm674, %v671, %v673
        %v676 = vsel %vm674, %v673, %v671
        %v677 = vsel %vm271, %v675, 0.0
        %v678 = vsel %vm272, %v676, 0.0
        %679 = vrot.lane.b32.xlu0 %v677, 48
        %v680 = vpop.permute.xlu0 %679
        %681 = vrot.lane.b32.xlu0 %v678, 48
        %v682 = vpop.permute.xlu0 %681
        %v683 = vsel %vm290, %v680, %v682
        %v684 = vsel %vm290, %v682, %v680
        %v685 = vsel %vm253, %v684, 0.0
        %v686 = vsel %vm254, %v683, 0.0
        %s687 = sld [smem:[#allocation2 + $0x4]]
        %v688 = vstv %s687
        %v689 = vmul.f32 %v688, %v685
        %v690 = vmul.f32 %v688, %v686
        %v691 = vadd.f32 %v668, %v689
        %v692 = vadd.f32 %v669, %v690
        %693 = vrot.lane.b32.xlu0 %v677, 32
        %v694 = vpop.permute.xlu0 %693
        %695 = vrot.lane.b32.xlu0 %v678, 32
        %v696 = vpop.permute.xlu0 %695
        %v697 = vsel %vm305, %v694, %v696
        %v698 = vsel %vm305, %v696, %v694
        %v699 = vsel %vm255, %v698, 0.0
        %v700 = vsel %vm256, %v697, 0.0
        %s701 = sld [smem:[#allocation2 + $0xb]]
        %v702 = vstv %s701
        %v703 = vmul.f32 %v702, %v699
        %v704 = vmul.f32 %v702, %v700
        %v705 = vadd.f32 %v691, %v703
        %v706 = vadd.f32 %v692, %v704
        %707 = vrot.lane.b32.xlu0 %v677, 16
        %v708 = vpop.permute.xlu0 %707
        %709 = vrot.lane.b32.xlu0 %v678, 16
        %v710 = vpop.permute.xlu0 %709
        %v711 = vsel %vm320, %v708, %v710
        %v712 = vsel %vm320, %v710, %v708
        %v713 = vsel %vm257, %v712, 0.0
        %v714 = vsel %vm258, %v711, 0.0
        %s715 = sld [smem:[#allocation2 + $0x12]]
        %v716 = vstv %s715
        %v717 = vmul.f32 %v716, %v713
        %v718 = vmul.f32 %v716, %v714
        %v719 = vadd.f32 %v705, %v717
        %v720 = vadd.f32 %v706, %v718
        %s721 = sld [smem:[#allocation2 + $0x19]]
        %v722 = vstv %s721
        %v723 = vmul.f32 %v722, %v677
        %v724 = vmul.f32 %v722, %v678
        %v725 = vadd.f32 %v719, %v723
        %v726 = vadd.f32 %v720, %v724
        %727 = vrot.lane.b32.xlu0 %v677, 112
        %v728 = vpop.permute.xlu0 %727
        %729 = vrot.lane.b32.xlu0 %v678, 112
        %v730 = vpop.permute.xlu0 %729
        %v731 = vsel %vm341, %v728, %v730
        %v732 = vsel %vm341, %v730, %v728
        %v733 = vsel %vm259, %v731, 0.0
        %v734 = vsel %vm260, %v732, 0.0
        %s735 = sld [smem:[#allocation2 + $0x20]]
        %v736 = vstv %s735
        %v737 = vmul.f32 %v736, %v733
        %v738 = vmul.f32 %v736, %v734
        %v739 = vadd.f32 %v725, %v737
        %v740 = vadd.f32 %v726, %v738
        %741 = vrot.lane.b32.xlu0 %v677, 96
        %v742 = vpop.permute.xlu0 %741
        %743 = vrot.lane.b32.xlu0 %v678, 96
        %v744 = vpop.permute.xlu0 %743
        %v745 = vsel %vm356, %v742, %v744
        %v746 = vsel %vm356, %v744, %v742
        %v747 = vsel %vm261, %v745, 0.0
        %v748 = vsel %vm262, %v746, 0.0
        %s749 = sld [smem:[#allocation2 + $0x27]]
        %v750 = vstv %s749
        %v751 = vmul.f32 %v750, %v747
        %v752 = vmul.f32 %v750, %v748
        %v753 = vadd.f32 %v739, %v751
        %v754 = vadd.f32 %v740, %v752
        %755 = vrot.lane.b32.xlu0 %v677, 80
        %v756 = vpop.permute.xlu0 %755
        %757 = vrot.lane.b32.xlu0 %v678, 80
        %v758 = vpop.permute.xlu0 %757
        %v759 = vsel %vm371, %v756, %v758
        %v760 = vsel %vm371, %v758, %v756
        %v761 = vsel %vm263, %v759, 0.0
        %v762 = vsel %vm264, %v760, 0.0
        %s763 = sld [smem:[#allocation2 + $0x2e]]
        %v764 = vstv %s763
        %v765 = vmul.f32 %v764, %v761
        %v766 = vmul.f32 %v764, %v762
        %v767 = vadd.f32 %v753, %v765
        %v768 = vadd.f32 %v754, %v766
        %769 = vrot.lane.b32.xlu0 %v224, 126
        %v770 = vpop.permute.xlu0 %769
        %771 = vrot.lane.b32.xlu0 %v225, 126
        %v772 = vpop.permute.xlu0 %771
        %vm773 = vcmp.lt.s32.totalorder %v227, 126
        %v774 = vsel %vm773, %v770, %v772
        %v775 = vsel %vm773, %v772, %v770
        %v776 = vsel %vm273, %v774, 0.0
        %v777 = vsel %vm274, %v775, 0.0
        %778 = vrot.lane.b32.xlu0 %v776, 48
        %v779 = vpop.permute.xlu0 %778
        %780 = vrot.lane.b32.xlu0 %v777, 48
        %v781 = vpop.permute.xlu0 %780
        %v782 = vsel %vm290, %v779, %v781
        %v783 = vsel %vm290, %v781, %v779
        %v784 = vsel %vm253, %v783, 0.0
        %v785 = vsel %vm254, %v782, 0.0
        %s786 = sld [smem:[#allocation2 + $0x5]]
        %v787 = vstv %s786
        %v788 = vmul.f32 %v787, %v784
        %v789 = vmul.f32 %v787, %v785
        %v790 = vadd.f32 %v767, %v788
        %v791 = vadd.f32 %v768, %v789
        %792 = vrot.lane.b32.xlu0 %v776, 32
        %v793 = vpop.permute.xlu0 %792
        %794 = vrot.lane.b32.xlu0 %v777, 32
        %v795 = vpop.permute.xlu0 %794
        %v796 = vsel %vm305, %v793, %v795
        %v797 = vsel %vm305, %v795, %v793
        %v798 = vsel %vm255, %v797, 0.0
        %v799 = vsel %vm256, %v796, 0.0
        %s800 = sld [smem:[#allocation2 + $0xc]]
        %v801 = vstv %s800
        %v802 = vmul.f32 %v801, %v798
        %v803 = vmul.f32 %v801, %v799
        %v804 = vadd.f32 %v790, %v802
        %v805 = vadd.f32 %v791, %v803
        %806 = vrot.lane.b32.xlu0 %v776, 16
        %v807 = vpop.permute.xlu0 %806
        %808 = vrot.lane.b32.xlu0 %v777, 16
        %v809 = vpop.permute.xlu0 %808
        %v810 = vsel %vm320, %v807, %v809
        %v811 = vsel %vm320, %v809, %v807
        %v812 = vsel %vm257, %v811, 0.0
        %v813 = vsel %vm258, %v810, 0.0
        %s814 = sld [smem:[#allocation2 + $0x13]]
        %v815 = vstv %s814
        %v816 = vmul.f32 %v815, %v812
        %v817 = vmul.f32 %v815, %v813
        %v818 = vadd.f32 %v804, %v816
        %v819 = vadd.f32 %v805, %v817
        %s820 = sld [smem:[#allocation2 + $0x1a]]
        %v821 = vstv %s820
        %v822 = vmul.f32 %v821, %v776
        %v823 = vmul.f32 %v821, %v777
        %v824 = vadd.f32 %v818, %v822
        %v825 = vadd.f32 %v819, %v823
        %826 = vrot.lane.b32.xlu0 %v776, 112
        %v827 = vpop.permute.xlu0 %826
        %828 = vrot.lane.b32.xlu0 %v777, 112
        %v829 = vpop.permute.xlu0 %828
        %v830 = vsel %vm341, %v827, %v829
        %v831 = vsel %vm341, %v829, %v827
        %v832 = vsel %vm259, %v830, 0.0
        %v833 = vsel %vm260, %v831, 0.0
        %s834 = sld [smem:[#allocation2 + $0x21]]
        %v835 = vstv %s834
        %v836 = vmul.f32 %v835, %v832
        %v837 = vmul.f32 %v835, %v833
        %v838 = vadd.f32 %v824, %v836
        %v839 = vadd.f32 %v825, %v837
        %840 = vrot.lane.b32.xlu0 %v776, 96
        %v841 = vpop.permute.xlu0 %840
        %842 = vrot.lane.b32.xlu0 %v777, 96
        %v843 = vpop.permute.xlu0 %842
        %v844 = vsel %vm356, %v841, %v843
        %v845 = vsel %vm356, %v843, %v841
        %v846 = vsel %vm261, %v844, 0.0
        %v847 = vsel %vm262, %v845, 0.0
        %s848 = sld [smem:[#allocation2 + $0x28]]
        %v849 = vstv %s848
        %v850 = vmul.f32 %v849, %v846
        %v851 = vmul.f32 %v849, %v847
        %v852 = vadd.f32 %v838, %v850
        %v853 = vadd.f32 %v839, %v851
        %854 = vrot.lane.b32.xlu0 %v776, 80
        %v855 = vpop.permute.xlu0 %854
        %856 = vrot.lane.b32.xlu0 %v777, 80
        %v857 = vpop.permute.xlu0 %856
        %v858 = vsel %vm371, %v855, %v857
        %v859 = vsel %vm371, %v857, %v855
        %v860 = vsel %vm263, %v858, 0.0
        %v861 = vsel %vm264, %v859, 0.0
        %s862 = sld [smem:[#allocation2 + $0x2f]]
        %v863 = vstv %s862
        %v864 = vmul.f32 %v863, %v860
        %v865 = vmul.f32 %v863, %v861
        %v866 = vadd.f32 %v852, %v864
        %v867 = vadd.f32 %v853, %v865
        %868 = vrot.lane.b32.xlu0 %v224, 125
        %v869 = vpop.permute.xlu0 %868
        %870 = vrot.lane.b32.xlu0 %v225, 125
        %v871 = vpop.permute.xlu0 %870
        %vm872 = vcmp.lt.s32.totalorder %v227, 125
        %v873 = vsel %vm872, %v869, %v871
        %v874 = vsel %vm872, %v871, %v869
        %v875 = vsel %vm275, %v873, 0.0
        %v876 = vsel %vm276, %v874, 0.0
        %877 = vrot.lane.b32.xlu0 %v875, 48
        %v878 = vpop.permute.xlu0 %877
        %879 = vrot.lane.b32.xlu0 %v876, 48
        %v880 = vpop.permute.xlu0 %879
        %v881 = vsel %vm290, %v878, %v880
        %v882 = vsel %vm290, %v880, %v878
        %v883 = vsel %vm253, %v882, 0.0
        %v884 = vsel %vm254, %v881, 0.0
        %s885 = sld [smem:[#allocation2 + $0x6]]
        %v886 = vstv %s885
        %v887 = vmul.f32 %v886, %v883
        %v888 = vmul.f32 %v886, %v884
        %v889 = vadd.f32 %v866, %v887
        %v890 = vadd.f32 %v867, %v888
        %891 = vrot.lane.b32.xlu0 %v875, 32
        %v892 = vpop.permute.xlu0 %891
        %893 = vrot.lane.b32.xlu0 %v876, 32
        %v894 = vpop.permute.xlu0 %893
        %v895 = vsel %vm305, %v892, %v894
        %v896 = vsel %vm305, %v894, %v892
        %v897 = vsel %vm255, %v896, 0.0
        %v898 = vsel %vm256, %v895, 0.0
        %s899 = sld [smem:[#allocation2 + $0xd]]
        %v900 = vstv %s899
        %v901 = vmul.f32 %v900, %v897
        %v902 = vmul.f32 %v900, %v898
        %v903 = vadd.f32 %v889, %v901
        %v904 = vadd.f32 %v890, %v902
        %905 = vrot.lane.b32.xlu0 %v875, 16
        %v906 = vpop.permute.xlu0 %905
        %907 = vrot.lane.b32.xlu0 %v876, 16
        %v908 = vpop.permute.xlu0 %907
        %v909 = vsel %vm320, %v906, %v908
        %v910 = vsel %vm320, %v908, %v906
        %v911 = vsel %vm257, %v910, 0.0
        %v912 = vsel %vm258, %v909, 0.0
        %s913 = sld [smem:[#allocation2 + $0x14]]
        %v914 = vstv %s913
        %v915 = vmul.f32 %v914, %v911
        %v916 = vmul.f32 %v914, %v912
        %v917 = vadd.f32 %v903, %v915
        %v918 = vadd.f32 %v904, %v916
        %s919 = sld [smem:[#allocation2 + $0x1b]]
        %v920 = vstv %s919
        %v921 = vmul.f32 %v920, %v875
        %v922 = vmul.f32 %v920, %v876
        %v923 = vadd.f32 %v917, %v921
        %v924 = vadd.f32 %v918, %v922
        %925 = vrot.lane.b32.xlu0 %v875, 112
        %v926 = vpop.permute.xlu0 %925
        %927 = vrot.lane.b32.xlu0 %v876, 112
        %v928 = vpop.permute.xlu0 %927
        %v929 = vsel %vm341, %v926, %v928
        %v930 = vsel %vm341, %v928, %v926
        %v931 = vsel %vm259, %v929, 0.0
        %v932 = vsel %vm260, %v930, 0.0
        %s933 = sld [smem:[#allocation2 + $0x22]]
        %v934 = vstv %s933
        %v935 = vmul.f32 %v934, %v931
        %v936 = vmul.f32 %v934, %v932
        %v937 = vadd.f32 %v923, %v935
        %v938 = vadd.f32 %v924, %v936
        %939 = vrot.lane.b32.xlu0 %v875, 96
        %v940 = vpop.permute.xlu0 %939
        %941 = vrot.lane.b32.xlu0 %v876, 96
        %v942 = vpop.permute.xlu0 %941
        %v943 = vsel %vm356, %v940, %v942
        %v944 = vsel %vm356, %v942, %v940
        %v945 = vsel %vm261, %v943, 0.0
        %v946 = vsel %vm262, %v944, 0.0
        %s947 = sld [smem:[#allocation2 + $0x29]]
        %v948 = vstv %s947
        %v949 = vmul.f32 %v948, %v945
        %v950 = vmul.f32 %v948, %v946
        %v951 = vadd.f32 %v937, %v949
        %v952 = vadd.f32 %v938, %v950
        %953 = vrot.lane.b32.xlu0 %v875, 80
        %v954 = vpop.permute.xlu0 %953
        %955 = vrot.lane.b32.xlu0 %v876, 80
        %v956 = vpop.permute.xlu0 %955
        %v957 = vsel %vm371, %v954, %v956
        %v958 = vsel %vm371, %v956, %v954
        %v959 = vsel %vm263, %v957, 0.0
        %v960 = vsel %vm264, %v958, 0.0
        %s961 = sld [smem:[#allocation2 + $0x30]]
        %v962 = vstv %s961
        %v963 = vmul.f32 %v962, %v959
        %v964 = vmul.f32 %v962, %v960
        %v965 = vadd.f32 %v951, %v963
        %v966 = vadd.f32 %v952, %v964
        %967 = vrot.lane.b32.xlu0 %v210, 3
        %v968 = vpop.permute.xlu0 %967
        %969 = vrot.lane.b32.xlu0 %v223, 3
        %v970 = vpop.permute.xlu0 %969
        %v971 = vsel %vm281, %v968, %v970
        %v972 = vsel %vm281, %v970, %v968
        %v973 = vsel %vm265, %v972, 0.0
        %v974 = vsel %vm266, %v971, 0.0
        %975 = vrot.lane.b32.xlu0 %v973, 48
        %v976 = vpop.permute.xlu0 %975
        %977 = vrot.lane.b32.xlu0 %v974, 48
        %v978 = vpop.permute.xlu0 %977
        %v979 = vsel %vm290, %v976, %v978
        %v980 = vsel %vm290, %v978, %v976
        %v981 = vsel %vm253, %v980, 0.0
        %v982 = vsel %vm254, %v979, 0.0
        %s983 = sld [smem:[#allocation2 + $0x31]]
        %v984 = vstv %s983
        %v985 = vmul.f32 %v984, %v981
        %v986 = vmul.f32 %v984, %v982
        %v987 = vadd.f32 %v965, %v985
        %v988 = vadd.f32 %v966, %v986
        %989 = vrot.lane.b32.xlu0 %v973, 32
        %v990 = vpop.permute.xlu0 %989
        %991 = vrot.lane.b32.xlu0 %v974, 32
        %v992 = vpop.permute.xlu0 %991
        %v993 = vsel %vm305, %v990, %v992
        %v994 = vsel %vm305, %v992, %v990
        %v995 = vsel %vm255, %v994, 0.0
        %v996 = vsel %vm256, %v993, 0.0
        %s997 = sld [smem:[#allocation2 + $0x38]]
        %v998 = vstv %s997
        %v999 = vmul.f32 %v998, %v995
        %v1000 = vmul.f32 %v998, %v996
        %v1001 = vadd.f32 %v987, %v999
        %v1002 = vadd.f32 %v988, %v1000
        %1003 = vrot.lane.b32.xlu0 %v973, 16
        %v1004 = vpop.permute.xlu0 %1003
        %1005 = vrot.lane.b32.xlu0 %v974, 16
        %v1006 = vpop.permute.xlu0 %1005
        %v1007 = vsel %vm320, %v1004, %v1006
        %v1008 = vsel %vm320, %v1006, %v1004
        %v1009 = vsel %vm257, %v1008, 0.0
        %v1010 = vsel %vm258, %v1007, 0.0
        %s1011 = sld [smem:[#allocation2 + $0x3f]]
        %v1012 = vstv %s1011
        %v1013 = vmul.f32 %v1012, %v1009
        %v1014 = vmul.f32 %v1012, %v1010
        %v1015 = vadd.f32 %v1001, %v1013
        %v1016 = vadd.f32 %v1002, %v1014
        %s1017 = sld [smem:[#allocation2 + $0x46]]
        %v1018 = vstv %s1017
        %v1019 = vmul.f32 %v1018, %v973
        %v1020 = vmul.f32 %v1018, %v974
        %v1021 = vadd.f32 %v1015, %v1019
        %v1022 = vadd.f32 %v1016, %v1020
        %1023 = vrot.lane.b32.xlu0 %v973, 112
        %v1024 = vpop.permute.xlu0 %1023
        %1025 = vrot.lane.b32.xlu0 %v974, 112
        %v1026 = vpop.permute.xlu0 %1025
        %v1027 = vsel %vm341, %v1024, %v1026
        %v1028 = vsel %vm341, %v1026, %v1024
        %v1029 = vsel %vm259, %v1027, 0.0
        %v1030 = vsel %vm260, %v1028, 0.0
        %s1031 = sld [smem:[#allocation2 + $0x4d]]
        %v1032 = vstv %s1031
        %v1033 = vmul.f32 %v1032, %v1029
        %v1034 = vmul.f32 %v1032, %v1030
        %v1035 = vadd.f32 %v1021, %v1033
        %v1036 = vadd.f32 %v1022, %v1034
        %1037 = vrot.lane.b32.xlu0 %v973, 96
        %v1038 = vpop.permute.xlu0 %1037
        %1039 = vrot.lane.b32.xlu0 %v974, 96
        %v1040 = vpop.permute.xlu0 %1039
        %v1041 = vsel %vm356, %v1038, %v1040
        %v1042 = vsel %vm356, %v1040, %v1038
        %v1043 = vsel %vm261, %v1041, 0.0
        %v1044 = vsel %vm262, %v1042, 0.0
        %s1045 = sld [smem:[#allocation2 + $0x54]]
        %v1046 = vstv %s1045
        %v1047 = vmul.f32 %v1046, %v1043
        %v1048 = vmul.f32 %v1046, %v1044
        %v1049 = vadd.f32 %v1035, %v1047
        %v1050 = vadd.f32 %v1036, %v1048
        %1051 = vrot.lane.b32.xlu0 %v973, 80
        %v1052 = vpop.permute.xlu0 %1051
        %1053 = vrot.lane.b32.xlu0 %v974, 80
        %v1054 = vpop.permute.xlu0 %1053
        %v1055 = vsel %vm371, %v1052, %v1054
        %v1056 = vsel %vm371, %v1054, %v1052
        %v1057 = vsel %vm263, %v1055, 0.0
        %v1058 = vsel %vm264, %v1056, 0.0
        %s1059 = sld [smem:[#allocation2 + $0x5b]]
        %v1060 = vstv %s1059
        %v1061 = vmul.f32 %v1060, %v1057
        %v1062 = vmul.f32 %v1060, %v1058
        %v1063 = vadd.f32 %v1049, %v1061
        %v1064 = vadd.f32 %v1050, %v1062
        %1065 = vrot.lane.b32.xlu0 %v210, 2
        %v1066 = vpop.permute.xlu0 %1065
        %1067 = vrot.lane.b32.xlu0 %v223, 2
        %v1068 = vpop.permute.xlu0 %1067
        %v1069 = vsel %vm386, %v1066, %v1068
        %v1070 = vsel %vm386, %v1068, %v1066
        %v1071 = vsel %vm267, %v1070, 0.0
        %v1072 = vsel %vm268, %v1069, 0.0
        %1073 = vrot.lane.b32.xlu0 %v1071, 48
        %v1074 = vpop.permute.xlu0 %1073
        %1075 = vrot.lane.b32.xlu0 %v1072, 48
        %v1076 = vpop.permute.xlu0 %1075
        %v1077 = vsel %vm290, %v1074, %v1076
        %v1078 = vsel %vm290, %v1076, %v1074
        %v1079 = vsel %vm253, %v1078, 0.0
        %v1080 = vsel %vm254, %v1077, 0.0
        %s1081 = sld [smem:[#allocation2 + $0x32]]
        %v1082 = vstv %s1081
        %v1083 = vmul.f32 %v1082, %v1079
        %v1084 = vmul.f32 %v1082, %v1080
        %v1085 = vadd.f32 %v1063, %v1083
        %v1086 = vadd.f32 %v1064, %v1084
        %1087 = vrot.lane.b32.xlu0 %v1071, 32
        %v1088 = vpop.permute.xlu0 %1087
        %1089 = vrot.lane.b32.xlu0 %v1072, 32
        %v1090 = vpop.permute.xlu0 %1089
        %v1091 = vsel %vm305, %v1088, %v1090
        %v1092 = vsel %vm305, %v1090, %v1088
        %v1093 = vsel %vm255, %v1092, 0.0
        %v1094 = vsel %vm256, %v1091, 0.0
        %s1095 = sld [smem:[#allocation2 + $0x39]]
        %v1096 = vstv %s1095
        %v1097 = vmul.f32 %v1096, %v1093
        %v1098 = vmul.f32 %v1096, %v1094
        %v1099 = vadd.f32 %v1085, %v1097
        %v1100 = vadd.f32 %v1086, %v1098
        %1101 = vrot.lane.b32.xlu0 %v1071, 16
        %v1102 = vpop.permute.xlu0 %1101
        %1103 = vrot.lane.b32.xlu0 %v1072, 16
        %v1104 = vpop.permute.xlu0 %1103
        %v1105 = vsel %vm320, %v1102, %v1104
        %v1106 = vsel %vm320, %v1104, %v1102
        %v1107 = vsel %vm257, %v1106, 0.0
        %v1108 = vsel %vm258, %v1105, 0.0
        %s1109 = sld [smem:[#allocation2 + $0x40]]
        %v1110 = vstv %s1109
        %v1111 = vmul.f32 %v1110, %v1107
        %v1112 = vmul.f32 %v1110, %v1108
        %v1113 = vadd.f32 %v1099, %v1111
        %v1114 = vadd.f32 %v1100, %v1112
        %s1115 = sld [smem:[#allocation2 + $0x47]]
        %v1116 = vstv %s1115
        %v1117 = vmul.f32 %v1116, %v1071
        %v1118 = vmul.f32 %v1116, %v1072
        %v1119 = vadd.f32 %v1113, %v1117
        %v1120 = vadd.f32 %v1114, %v1118
        %1121 = vrot.lane.b32.xlu0 %v1071, 112
        %v1122 = vpop.permute.xlu0 %1121
        %1123 = vrot.lane.b32.xlu0 %v1072, 112
        %v1124 = vpop.permute.xlu0 %1123
        %v1125 = vsel %vm341, %v1122, %v1124
        %v1126 = vsel %vm341, %v1124, %v1122
        %v1127 = vsel %vm259, %v1125, 0.0
        %v1128 = vsel %vm260, %v1126, 0.0
        %s1129 = sld [smem:[#allocation2 + $0x4e]]
        %v1130 = vstv %s1129
        %v1131 = vmul.f32 %v1130, %v1127
        %v1132 = vmul.f32 %v1130, %v1128
        %v1133 = vadd.f32 %v1119, %v1131
        %v1134 = vadd.f32 %v1120, %v1132
        %1135 = vrot.lane.b32.xlu0 %v1071, 96
        %v1136 = vpop.permute.xlu0 %1135
        %1137 = vrot.lane.b32.xlu0 %v1072, 96
        %v1138 = vpop.permute.xlu0 %1137
        %v1139 = vsel %vm356, %v1136, %v1138
        %v1140 = vsel %vm356, %v1138, %v1136
        %v1141 = vsel %vm261, %v1139, 0.0
        %v1142 = vsel %vm262, %v1140, 0.0
        %s1143 = sld [smem:[#allocation2 + $0x55]]
        %v1144 = vstv %s1143
        %v1145 = vmul.f32 %v1144, %v1141
        %v1146 = vmul.f32 %v1144, %v1142
        %v1147 = vadd.f32 %v1133, %v1145
        %v1148 = vadd.f32 %v1134, %v1146
        %1149 = vrot.lane.b32.xlu0 %v1071, 80
        %v1150 = vpop.permute.xlu0 %1149
        %1151 = vrot.lane.b32.xlu0 %v1072, 80
        %v1152 = vpop.permute.xlu0 %1151
        %v1153 = vsel %vm371, %v1150, %v1152
        %v1154 = vsel %vm371, %v1152, %v1150
        %v1155 = vsel %vm263, %v1153, 0.0
        %v1156 = vsel %vm264, %v1154, 0.0
        %s1157 = sld [smem:[#allocation2 + $0x5c]]
        %v1158 = vstv %s1157
        %v1159 = vmul.f32 %v1158, %v1155
        %v1160 = vmul.f32 %v1158, %v1156
        %v1161 = vadd.f32 %v1147, %v1159
        %v1162 = vadd.f32 %v1148, %v1160
        %1163 = vrot.lane.b32.xlu0 %v210, 1
        %v1164 = vpop.permute.xlu0 %1163
        %1165 = vrot.lane.b32.xlu0 %v223, 1
        %v1166 = vpop.permute.xlu0 %1165
        %v1167 = vsel %vm485, %v1164, %v1166
        %v1168 = vsel %vm485, %v1166, %v1164
        %v1169 = vsel %vm269, %v1168, 0.0
        %v1170 = vsel %vm270, %v1167, 0.0
        %1171 = vrot.lane.b32.xlu0 %v1169, 48
        %v1172 = vpop.permute.xlu0 %1171
        %1173 = vrot.lane.b32.xlu0 %v1170, 48
        %v1174 = vpop.permute.xlu0 %1173
        %v1175 = vsel %vm290, %v1172, %v1174
        %v1176 = vsel %vm290, %v1174, %v1172
        %v1177 = vsel %vm253, %v1176, 0.0
        %v1178 = vsel %vm254, %v1175, 0.0
        %s1179 = sld [smem:[#allocation2 + $0x33]]
        %v1180 = vstv %s1179
        %v1181 = vmul.f32 %v1180, %v1177
        %v1182 = vmul.f32 %v1180, %v1178
        %v1183 = vadd.f32 %v1161, %v1181
        %v1184 = vadd.f32 %v1162, %v1182
        %1185 = vrot.lane.b32.xlu0 %v1169, 32
        %v1186 = vpop.permute.xlu0 %1185
        %1187 = vrot.lane.b32.xlu0 %v1170, 32
        %v1188 = vpop.permute.xlu0 %1187
        %v1189 = vsel %vm305, %v1186, %v1188
        %v1190 = vsel %vm305, %v1188, %v1186
        %v1191 = vsel %vm255, %v1190, 0.0
        %v1192 = vsel %vm256, %v1189, 0.0
        %s1193 = sld [smem:[#allocation2 + $0x3a]]
        %v1194 = vstv %s1193
        %v1195 = vmul.f32 %v1194, %v1191
        %v1196 = vmul.f32 %v1194, %v1192
        %v1197 = vadd.f32 %v1183, %v1195
        %v1198 = vadd.f32 %v1184, %v1196
        %1199 = vrot.lane.b32.xlu0 %v1169, 16
        %v1200 = vpop.permute.xlu0 %1199
        %1201 = vrot.lane.b32.xlu0 %v1170, 16
        %v1202 = vpop.permute.xlu0 %1201
        %v1203 = vsel %vm320, %v1200, %v1202
        %v1204 = vsel %vm320, %v1202, %v1200
        %v1205 = vsel %vm257, %v1204, 0.0
        %v1206 = vsel %vm258, %v1203, 0.0
        %s1207 = sld [smem:[#allocation2 + $0x41]]
        %v1208 = vstv %s1207
        %v1209 = vmul.f32 %v1208, %v1205
        %v1210 = vmul.f32 %v1208, %v1206
        %v1211 = vadd.f32 %v1197, %v1209
        %v1212 = vadd.f32 %v1198, %v1210
        %s1213 = sld [smem:[#allocation2 + $0x48]]
        %v1214 = vstv %s1213
        %v1215 = vmul.f32 %v1214, %v1169
        %v1216 = vmul.f32 %v1214, %v1170
        %v1217 = vadd.f32 %v1211, %v1215
        %v1218 = vadd.f32 %v1212, %v1216
        %1219 = vrot.lane.b32.xlu0 %v1169, 112
        %v1220 = vpop.permute.xlu0 %1219
        %1221 = vrot.lane.b32.xlu0 %v1170, 112
        %v1222 = vpop.permute.xlu0 %1221
        %v1223 = vsel %vm341, %v1220, %v1222
        %v1224 = vsel %vm341, %v1222, %v1220
        %v1225 = vsel %vm259, %v1223, 0.0
        %v1226 = vsel %vm260, %v1224, 0.0
        %s1227 = sld [smem:[#allocation2 + $0x4f]]
        %v1228 = vstv %s1227
        %v1229 = vmul.f32 %v1228, %v1225
        %v1230 = vmul.f32 %v1228, %v1226
        %v1231 = vadd.f32 %v1217, %v1229
        %v1232 = vadd.f32 %v1218, %v1230
        %1233 = vrot.lane.b32.xlu0 %v1169, 96
        %v1234 = vpop.permute.xlu0 %1233
        %1235 = vrot.lane.b32.xlu0 %v1170, 96
        %v1236 = vpop.permute.xlu0 %1235
        %v1237 = vsel %vm356, %v1234, %v1236
        %v1238 = vsel %vm356, %v1236, %v1234
        %v1239 = vsel %vm261, %v1237, 0.0
        %v1240 = vsel %vm262, %v1238, 0.0
        %s1241 = sld [smem:[#allocation2 + $0x56]]
        %v1242 = vstv %s1241
        %v1243 = vmul.f32 %v1242, %v1239
        %v1244 = vmul.f32 %v1242, %v1240
        %v1245 = vadd.f32 %v1231, %v1243
        %v1246 = vadd.f32 %v1232, %v1244
        %1247 = vrot.lane.b32.xlu0 %v1169, 80
        %v1248 = vpop.permute.xlu0 %1247
        %1249 = vrot.lane.b32.xlu0 %v1170, 80
        %v1250 = vpop.permute.xlu0 %1249
        %v1251 = vsel %vm371, %v1248, %v1250
        %v1252 = vsel %vm371, %v1250, %v1248
        %v1253 = vsel %vm263, %v1251, 0.0
        %v1254 = vsel %vm264, %v1252, 0.0
        %s1255 = sld [smem:[#allocation2 + $0x5d]]
        %v1256 = vstv %s1255
        %v1257 = vmul.f32 %v1256, %v1253
        %v1258 = vmul.f32 %v1256, %v1254
        %v1259 = vadd.f32 %v1245, %v1257
        %v1260 = vadd.f32 %v1246, %v1258
        %1261 = vrot.lane.b32.xlu0 %v210, 48
        %v1262 = vpop.permute.xlu0 %1261
        %1263 = vrot.lane.b32.xlu0 %v223, 48
        %v1264 = vpop.permute.xlu0 %1263
        %v1265 = vsel %vm290, %v1262, %v1264
        %v1266 = vsel %vm290, %v1264, %v1262
        %v1267 = vsel %vm253, %v1266, 0.0
        %v1268 = vsel %vm254, %v1265, 0.0
        %s1269 = sld [smem:[#allocation2 + $0x34]]
        %v1270 = vstv %s1269
        %v1271 = vmul.f32 %v1270, %v1267
        %v1272 = vmul.f32 %v1270, %v1268
        %v1273 = vadd.f32 %v1259, %v1271
        %v1274 = vadd.f32 %v1260, %v1272
        %1275 = vrot.lane.b32.xlu0 %v210, 32
        %v1276 = vpop.permute.xlu0 %1275
        %1277 = vrot.lane.b32.xlu0 %v223, 32
        %v1278 = vpop.permute.xlu0 %1277
        %v1279 = vsel %vm305, %v1276, %v1278
        %v1280 = vsel %vm305, %v1278, %v1276
        %v1281 = vsel %vm255, %v1280, 0.0
        %v1282 = vsel %vm256, %v1279, 0.0
        %s1283 = sld [smem:[#allocation2 + $0x3b]]
        %v1284 = vstv %s1283
        %v1285 = vmul.f32 %v1284, %v1281
        %v1286 = vmul.f32 %v1284, %v1282
        %v1287 = vadd.f32 %v1273, %v1285
        %v1288 = vadd.f32 %v1274, %v1286
        %1289 = vrot.lane.b32.xlu0 %v210, 16
        %v1290 = vpop.permute.xlu0 %1289
        %1291 = vrot.lane.b32.xlu0 %v223, 16
        %v1292 = vpop.permute.xlu0 %1291
        %v1293 = vsel %vm320, %v1290, %v1292
        %v1294 = vsel %vm320, %v1292, %v1290
        %v1295 = vsel %vm257, %v1294, 0.0
        %v1296 = vsel %vm258, %v1293, 0.0
        %s1297 = sld [smem:[#allocation2 + $0x42]]
        %v1298 = vstv %s1297
        %v1299 = vmul.f32 %v1298, %v1295
        %v1300 = vmul.f32 %v1298, %v1296
        %v1301 = vadd.f32 %v1287, %v1299
        %v1302 = vadd.f32 %v1288, %v1300
        %s1303 = sld [smem:[#allocation2 + $0x49]]
        %v1304 = vstv %s1303
        %v1305 = vmul.f32 %v1304, %v210
        %v1306 = vmul.f32 %v1304, %v223
        %v1307 = vadd.f32 %v1301, %v1305
        %v1308 = vadd.f32 %v1302, %v1306
        %1309 = vrot.lane.b32.xlu0 %v210, 112
        %v1310 = vpop.permute.xlu0 %1309
        %1311 = vrot.lane.b32.xlu0 %v223, 112
        %v1312 = vpop.permute.xlu0 %1311
        %v1313 = vsel %vm341, %v1310, %v1312
        %v1314 = vsel %vm341, %v1312, %v1310
        %v1315 = vsel %vm259, %v1313, 0.0
        %v1316 = vsel %vm260, %v1314, 0.0
        %s1317 = sld [smem:[#allocation2 + $0x50]]
        %v1318 = vstv %s1317
        %v1319 = vmul.f32 %v1318, %v1315
        %v1320 = vmul.f32 %v1318, %v1316
        %v1321 = vadd.f32 %v1307, %v1319
        %v1322 = vadd.f32 %v1308, %v1320
        %1323 = vrot.lane.b32.xlu0 %v210, 96
        %v1324 = vpop.permute.xlu0 %1323
        %1325 = vrot.lane.b32.xlu0 %v223, 96
        %v1326 = vpop.permute.xlu0 %1325
        %v1327 = vsel %vm356, %v1324, %v1326
        %v1328 = vsel %vm356, %v1326, %v1324
        %v1329 = vsel %vm261, %v1327, 0.0
        %v1330 = vsel %vm262, %v1328, 0.0
        %s1331 = sld [smem:[#allocation2 + $0x57]]
        %v1332 = vstv %s1331
        %v1333 = vmul.f32 %v1332, %v1329
        %v1334 = vmul.f32 %v1332, %v1330
        %v1335 = vadd.f32 %v1321, %v1333
        %v1336 = vadd.f32 %v1322, %v1334
        %1337 = vrot.lane.b32.xlu0 %v210, 80
        %v1338 = vpop.permute.xlu0 %1337
        %1339 = vrot.lane.b32.xlu0 %v223, 80
        %v1340 = vpop.permute.xlu0 %1339
        %v1341 = vsel %vm371, %v1338, %v1340
        %v1342 = vsel %vm371, %v1340, %v1338
        %v1343 = vsel %vm263, %v1341, 0.0
        %v1344 = vsel %vm264, %v1342, 0.0
        %s1345 = sld [smem:[#allocation2 + $0x5e]]
        %v1346 = vstv %s1345
        %v1347 = vmul.f32 %v1346, %v1343
        %v1348 = vmul.f32 %v1346, %v1344
        %v1349 = vadd.f32 %v1335, %v1347
        %v1350 = vadd.f32 %v1336, %v1348
        %1351 = vrot.lane.b32.xlu0 %v210, 127
        %v1352 = vpop.permute.xlu0 %1351
        %1353 = vrot.lane.b32.xlu0 %v223, 127
        %v1354 = vpop.permute.xlu0 %1353
        %v1355 = vsel %vm674, %v1352, %v1354
        %v1356 = vsel %vm674, %v1354, %v1352
        %v1357 = vsel %vm271, %v1355, 0.0
        %v1358 = vsel %vm272, %v1356, 0.0
        %1359 = vrot.lane.b32.xlu0 %v1357, 48
        %v1360 = vpop.permute.xlu0 %1359
        %1361 = vrot.lane.b32.xlu0 %v1358, 48
        %v1362 = vpop.permute.xlu0 %1361
        %v1363 = vsel %vm290, %v1360, %v1362
        %v1364 = vsel %vm290, %v1362, %v1360
        %v1365 = vsel %vm253, %v1364, 0.0
        %v1366 = vsel %vm254, %v1363, 0.0
        %s1367 = sld [smem:[#allocation2 + $0x35]]
        %v1368 = vstv %s1367
        %v1369 = vmul.f32 %v1368, %v1365
        %v1370 = vmul.f32 %v1368, %v1366
        %v1371 = vadd.f32 %v1349, %v1369
        %v1372 = vadd.f32 %v1350, %v1370
        %1373 = vrot.lane.b32.xlu0 %v1357, 32
        %v1374 = vpop.permute.xlu0 %1373
        %1375 = vrot.lane.b32.xlu0 %v1358, 32
        %v1376 = vpop.permute.xlu0 %1375
        %v1377 = vsel %vm305, %v1374, %v1376
        %v1378 = vsel %vm305, %v1376, %v1374
        %v1379 = vsel %vm255, %v1378, 0.0
        %v1380 = vsel %vm256, %v1377, 0.0
        %s1381 = sld [smem:[#allocation2 + $0x3c]]
        %v1382 = vstv %s1381
        %v1383 = vmul.f32 %v1382, %v1379
        %v1384 = vmul.f32 %v1382, %v1380
        %v1385 = vadd.f32 %v1371, %v1383
        %v1386 = vadd.f32 %v1372, %v1384
        %1387 = vrot.lane.b32.xlu0 %v1357, 16
        %v1388 = vpop.permute.xlu0 %1387
        %1389 = vrot.lane.b32.xlu0 %v1358, 16
        %v1390 = vpop.permute.xlu0 %1389
        %v1391 = vsel %vm320, %v1388, %v1390
        %v1392 = vsel %vm320, %v1390, %v1388
        %v1393 = vsel %vm257, %v1392, 0.0
        %v1394 = vsel %vm258, %v1391, 0.0
        %s1395 = sld [smem:[#allocation2 + $0x43]]
        %v1396 = vstv %s1395
        %v1397 = vmul.f32 %v1396, %v1393
        %v1398 = vmul.f32 %v1396, %v1394
        %v1399 = vadd.f32 %v1385, %v1397
        %v1400 = vadd.f32 %v1386, %v1398
        %s1401 = sld [smem:[#allocation2 + $0x4a]]
        %v1402 = vstv %s1401
        %v1403 = vmul.f32 %v1402, %v1357
        %v1404 = vmul.f32 %v1402, %v1358
        %v1405 = vadd.f32 %v1399, %v1403
        %v1406 = vadd.f32 %v1400, %v1404
        %1407 = vrot.lane.b32.xlu0 %v1357, 112
        %v1408 = vpop.permute.xlu0 %1407
        %1409 = vrot.lane.b32.xlu0 %v1358, 112
        %v1410 = vpop.permute.xlu0 %1409
        %v1411 = vsel %vm341, %v1408, %v1410
        %v1412 = vsel %vm341, %v1410, %v1408
        %v1413 = vsel %vm259, %v1411, 0.0
        %v1414 = vsel %vm260, %v1412, 0.0
        %s1415 = sld [smem:[#allocation2 + $0x51]]
        %v1416 = vstv %s1415
        %v1417 = vmul.f32 %v1416, %v1413
        %v1418 = vmul.f32 %v1416, %v1414
        %v1419 = vadd.f32 %v1405, %v1417
        %v1420 = vadd.f32 %v1406, %v1418
        %1421 = vrot.lane.b32.xlu0 %v1357, 96
        %v1422 = vpop.permute.xlu0 %1421
        %1423 = vrot.lane.b32.xlu0 %v1358, 96
        %v1424 = vpop.permute.xlu0 %1423
        %v1425 = vsel %vm356, %v1422, %v1424
        %v1426 = vsel %vm356, %v1424, %v1422
        %v1427 = vsel %vm261, %v1425, 0.0
        %v1428 = vsel %vm262, %v1426, 0.0
        %s1429 = sld [smem:[#allocation2 + $0x58]]
        %v1430 = vstv %s1429
        %v1431 = vmul.f32 %v1430, %v1427
        %v1432 = vmul.f32 %v1430, %v1428
        %v1433 = vadd.f32 %v1419, %v1431
        %v1434 = vadd.f32 %v1420, %v1432
        %1435 = vrot.lane.b32.xlu0 %v1357, 80
        %v1436 = vpop.permute.xlu0 %1435
        %1437 = vrot.lane.b32.xlu0 %v1358, 80
        %v1438 = vpop.permute.xlu0 %1437
        %v1439 = vsel %vm371, %v1436, %v1438
        %v1440 = vsel %vm371, %v1438, %v1436
        %v1441 = vsel %vm263, %v1439, 0.0
        %v1442 = vsel %vm264, %v1440, 0.0
        %s1443 = sld [smem:[#allocation2 + $0x5f]]
        %v1444 = vstv %s1443
        %v1445 = vmul.f32 %v1444, %v1441
        %v1446 = vmul.f32 %v1444, %v1442
        %v1447 = vadd.f32 %v1433, %v1445
        %v1448 = vadd.f32 %v1434, %v1446
        %1449 = vrot.lane.b32.xlu0 %v210, 126
        %v1450 = vpop.permute.xlu0 %1449
        %1451 = vrot.lane.b32.xlu0 %v223, 126
        %v1452 = vpop.permute.xlu0 %1451
        %v1453 = vsel %vm773, %v1450, %v1452
        %v1454 = vsel %vm773, %v1452, %v1450
        %v1455 = vsel %vm273, %v1453, 0.0
        %v1456 = vsel %vm274, %v1454, 0.0
        %1457 = vrot.lane.b32.xlu0 %v1455, 48
        %v1458 = vpop.permute.xlu0 %1457
        %1459 = vrot.lane.b32.xlu0 %v1456, 48
        %v1460 = vpop.permute.xlu0 %1459
        %v1461 = vsel %vm290, %v1458, %v1460
        %v1462 = vsel %vm290, %v1460, %v1458
        %v1463 = vsel %vm253, %v1462, 0.0
        %v1464 = vsel %vm254, %v1461, 0.0
        %s1465 = sld [smem:[#allocation2 + $0x36]]
        %v1466 = vstv %s1465
        %v1467 = vmul.f32 %v1466, %v1463
        %v1468 = vmul.f32 %v1466, %v1464
        %v1469 = vadd.f32 %v1447, %v1467
        %v1470 = vadd.f32 %v1448, %v1468
        %1471 = vrot.lane.b32.xlu0 %v1455, 32
        %v1472 = vpop.permute.xlu0 %1471
        %1473 = vrot.lane.b32.xlu0 %v1456, 32
        %v1474 = vpop.permute.xlu0 %1473
        %v1475 = vsel %vm305, %v1472, %v1474
        %v1476 = vsel %vm305, %v1474, %v1472
        %v1477 = vsel %vm255, %v1476, 0.0
        %v1478 = vsel %vm256, %v1475, 0.0
        %s1479 = sld [smem:[#allocation2 + $0x3d]]
        %v1480 = vstv %s1479
        %v1481 = vmul.f32 %v1480, %v1477
        %v1482 = vmul.f32 %v1480, %v1478
        %v1483 = vadd.f32 %v1469, %v1481
        %v1484 = vadd.f32 %v1470, %v1482
        %1485 = vrot.lane.b32.xlu0 %v1455, 16
        %v1486 = vpop.permute.xlu0 %1485
        %1487 = vrot.lane.b32.xlu0 %v1456, 16
        %v1488 = vpop.permute.xlu0 %1487
        %v1489 = vsel %vm320, %v1486, %v1488
        %v1490 = vsel %vm320, %v1488, %v1486
        %v1491 = vsel %vm257, %v1490, 0.0
        %v1492 = vsel %vm258, %v1489, 0.0
        %s1493 = sld [smem:[#allocation2 + $0x44]]
        %v1494 = vstv %s1493
        %v1495 = vmul.f32 %v1494, %v1491
        %v1496 = vmul.f32 %v1494, %v1492
        %v1497 = vadd.f32 %v1483, %v1495
        %v1498 = vadd.f32 %v1484, %v1496
        %s1499 = sld [smem:[#allocation2 + $0x4b]]
        %v1500 = vstv %s1499
        %v1501 = vmul.f32 %v1500, %v1455
        %v1502 = vmul.f32 %v1500, %v1456
        %v1503 = vadd.f32 %v1497, %v1501
        %v1504 = vadd.f32 %v1498, %v1502
        %1505 = vrot.lane.b32.xlu0 %v1455, 112
        %v1506 = vpop.permute.xlu0 %1505
        %1507 = vrot.lane.b32.xlu0 %v1456, 112
        %v1508 = vpop.permute.xlu0 %1507
        %v1509 = vsel %vm341, %v1506, %v1508
        %v1510 = vsel %vm341, %v1508, %v1506
        %v1511 = vsel %vm259, %v1509, 0.0
        %v1512 = vsel %vm260, %v1510, 0.0
        %s1513 = sld [smem:[#allocation2 + $0x52]]
        %v1514 = vstv %s1513
        %v1515 = vmul.f32 %v1514, %v1511
        %v1516 = vmul.f32 %v1514, %v1512
        %v1517 = vadd.f32 %v1503, %v1515
        %v1518 = vadd.f32 %v1504, %v1516
        %1519 = vrot.lane.b32.xlu0 %v1455, 96
        %v1520 = vpop.permute.xlu0 %1519
        %1521 = vrot.lane.b32.xlu0 %v1456, 96
        %v1522 = vpop.permute.xlu0 %1521
        %v1523 = vsel %vm356, %v1520, %v1522
        %v1524 = vsel %vm356, %v1522, %v1520
        %v1525 = vsel %vm261, %v1523, 0.0
        %v1526 = vsel %vm262, %v1524, 0.0
        %s1527 = sld [smem:[#allocation2 + $0x59]]
        %v1528 = vstv %s1527
        %v1529 = vmul.f32 %v1528, %v1525
        %v1530 = vmul.f32 %v1528, %v1526
        %v1531 = vadd.f32 %v1517, %v1529
        %v1532 = vadd.f32 %v1518, %v1530
        %1533 = vrot.lane.b32.xlu0 %v1455, 80
        %v1534 = vpop.permute.xlu0 %1533
        %1535 = vrot.lane.b32.xlu0 %v1456, 80
        %v1536 = vpop.permute.xlu0 %1535
        %v1537 = vsel %vm371, %v1534, %v1536
        %v1538 = vsel %vm371, %v1536, %v1534
        %v1539 = vsel %vm263, %v1537, 0.0
        %v1540 = vsel %vm264, %v1538, 0.0
        %s1541 = sld [smem:[#allocation2 + $0x60]]
        %v1542 = vstv %s1541
        %v1543 = vmul.f32 %v1542, %v1539
        %v1544 = vmul.f32 %v1542, %v1540
        %v1545 = vadd.f32 %v1531, %v1543
        %v1546 = vadd.f32 %v1532, %v1544
        %1547 = vrot.lane.b32.xlu0 %v210, 125
        %v1548 = vpop.permute.xlu0 %1547
        %1549 = vrot.lane.b32.xlu0 %v223, 125
        %v1550 = vpop.permute.xlu0 %1549
        %v1551 = vsel %vm872, %v1548, %v1550
        %v1552 = vsel %vm872, %v1550, %v1548
        %v1553 = vsel %vm275, %v1551, 0.0
        %v1554 = vsel %vm276, %v1552, 0.0
        %1555 = vrot.lane.b32.xlu0 %v1553, 48
        %v1556 = vpop.permute.xlu0 %1555
        %1557 = vrot.lane.b32.xlu0 %v1554, 48
        %v1558 = vpop.permute.xlu0 %1557
        %v1559 = vsel %vm290, %v1556, %v1558
        %v1560 = vsel %vm290, %v1558, %v1556
        %v1561 = vsel %vm253, %v1560, 0.0
        %v1562 = vsel %vm254, %v1559, 0.0
        %s1563 = sld [smem:[#allocation2 + $0x37]]
        %v1564 = vstv %s1563
        %v1565 = vmul.f32 %v1564, %v1561
        %v1566 = vmul.f32 %v1564, %v1562
        %v1567 = vadd.f32 %v1545, %v1565
        %v1568 = vadd.f32 %v1546, %v1566
        %1569 = vrot.lane.b32.xlu0 %v1553, 32
        %v1570 = vpop.permute.xlu0 %1569
        %1571 = vrot.lane.b32.xlu0 %v1554, 32
        %v1572 = vpop.permute.xlu0 %1571
        %v1573 = vsel %vm305, %v1570, %v1572
        %v1574 = vsel %vm305, %v1572, %v1570
        %v1575 = vsel %vm255, %v1574, 0.0
        %v1576 = vsel %vm256, %v1573, 0.0
        %s1577 = sld [smem:[#allocation2 + $0x3e]]
        %v1578 = vstv %s1577
        %v1579 = vmul.f32 %v1578, %v1575
        %v1580 = vmul.f32 %v1578, %v1576
        %v1581 = vadd.f32 %v1567, %v1579
        %v1582 = vadd.f32 %v1568, %v1580
        %1583 = vrot.lane.b32.xlu0 %v1553, 16
        %v1584 = vpop.permute.xlu0 %1583
        %1585 = vrot.lane.b32.xlu0 %v1554, 16
        %v1586 = vpop.permute.xlu0 %1585
        %v1587 = vsel %vm320, %v1584, %v1586
        %v1588 = vsel %vm320, %v1586, %v1584
        %v1589 = vsel %vm257, %v1588, 0.0
        %v1590 = vsel %vm258, %v1587, 0.0
        %s1591 = sld [smem:[#allocation2 + $0x45]]
        %v1592 = vstv %s1591
        %v1593 = vmul.f32 %v1592, %v1589
        %v1594 = vmul.f32 %v1592, %v1590
        %v1595 = vadd.f32 %v1581, %v1593
        %v1596 = vadd.f32 %v1582, %v1594
        %s1597 = sld [smem:[#allocation2 + $0x4c]]
        %v1598 = vstv %s1597
        %v1599 = vmul.f32 %v1598, %v1553
        %v1600 = vmul.f32 %v1598, %v1554
        %v1601 = vadd.f32 %v1595, %v1599
        %v1602 = vadd.f32 %v1596, %v1600
        %1603 = vrot.lane.b32.xlu0 %v1553, 112
        %v1604 = vpop.permute.xlu0 %1603
        %1605 = vrot.lane.b32.xlu0 %v1554, 112
        %v1606 = vpop.permute.xlu0 %1605
        %v1607 = vsel %vm341, %v1604, %v1606
        %v1608 = vsel %vm341, %v1606, %v1604
        %v1609 = vsel %vm259, %v1607, 0.0
        %v1610 = vsel %vm260, %v1608, 0.0
        %s1611 = sld [smem:[#allocation2 + $0x53]]
        %v1612 = vstv %s1611
        %v1613 = vmul.f32 %v1612, %v1609
        %v1614 = vmul.f32 %v1612, %v1610
        %v1615 = vadd.f32 %v1601, %v1613
        %v1616 = vadd.f32 %v1602, %v1614
        %1617 = vrot.lane.b32.xlu0 %v1553, 96
        %v1618 = vpop.permute.xlu0 %1617
        %1619 = vrot.lane.b32.xlu0 %v1554, 96
        %v1620 = vpop.permute.xlu0 %1619
        %v1621 = vsel %vm356, %v1618, %v1620
        %v1622 = vsel %vm356, %v1620, %v1618
        %v1623 = vsel %vm261, %v1621, 0.0
        %v1624 = vsel %vm262, %v1622, 0.0
        %s1625 = sld [smem:[#allocation2 + $0x5a]]
        %v1626 = vstv %s1625
        %v1627 = vmul.f32 %v1626, %v1623
        %v1628 = vmul.f32 %v1626, %v1624
        %v1629 = vadd.f32 %v1615, %v1627
        %v1630 = vadd.f32 %v1616, %v1628
        %1631 = vrot.lane.b32.xlu0 %v1553, 80
        %v1632 = vpop.permute.xlu0 %1631
        %1633 = vrot.lane.b32.xlu0 %v1554, 80
        %v1634 = vpop.permute.xlu0 %1633
        %v1635 = vsel %vm371, %v1632, %v1634
        %v1636 = vsel %vm371, %v1634, %v1632
        %v1637 = vsel %vm263, %v1635, 0.0
        %v1638 = vsel %vm264, %v1636, 0.0
        %s1639 = sld [smem:[#allocation2 + $0x61]]
        %v1640 = vstv %s1639
        %v1641 = vmul.f32 %v1640, %v1637
        %v1642 = vmul.f32 %v1640, %v1638
        %v1643 = vadd.f32 %v1629, %v1641
        %v1644 = vadd.f32 %v1630, %v1642
        %v1645 = vxor.u32 %v1643, 2147483648
        %v1646 = vxor.u32 %v1644, 2147483648
        %v1647 = vmul.f32 %v1645, 1.442695
        %v1648 = vpow.pop %v1647
        %v1649 = vmul.f32 %v1646, 1.442695
        %v1650 = vpow.pop %v1649
        %v1651 = vadd.f32 %v1648, 1.0
        %v1652 = vadd.f32 %v1650, 1.0
        %v1653 = vrcp.pop %v1651
        %v1654 = vmul.f32 %v1651, %v1653
        %v1655 = vsub.f32 1.0, %v1654
        %v1656 = vmul.f32 %v1653, %v1655
        %v1657 = vadd.f32 %v1653, %v1656
        %vm1658 = vweird.f32 %v1651
        %vm1659 = vweird.f32 %v1653
        %vm1660 = vmor %vm1658, %vm1659
        %v1661 = vsel %vm1660, %v1653, %v1657
        %v1662 = vand.u32 2147483647, %v1651
        %vm1663 = vcmp.eq.f32.partialorder %v1662, 8.507059e+37
        %v1664 = vand.u32 %v1651, 2147483648
        %v1665 = vor.u32 1.1754944e-38, %v1664
        %v1666 = vsel %vm1663, %v1665, %v1661
        %v1667 = vmul.f32 1.0, %v1666
        %v1668 = vrcp.pop %v1652
        %v1669 = vmul.f32 %v1652, %v1668
        %v1670 = vsub.f32 1.0, %v1669
        %v1671 = vmul.f32 %v1668, %v1670
        %v1672 = vadd.f32 %v1668, %v1671
        %vm1673 = vweird.f32 %v1652
        %vm1674 = vweird.f32 %v1668
        %vm1675 = vmor %vm1673, %vm1674
        %v1676 = vsel %vm1675, %v1668, %v1672
        %v1677 = vand.u32 2147483647, %v1652
        %vm1678 = vcmp.eq.f32.partialorder %v1677, 8.507059e+37
        %v1679 = vand.u32 %v1652, 2147483648
        %v1680 = vor.u32 1.1754944e-38, %v1679
        %v1681 = vsel %vm1678, %v1680, %v1676
        %v1682 = vmul.f32 1.0, %v1681
        %v1685 = vrot.slane %v1682, 7
        %vm1686 = vcmask 1040384
        %v1687 = vsel %vm1686, %v1667, %v1685
        %v1689 = vlaneseq
        %vm1690 = vcmp.ge.s32.totalorder %v1689, 0
        %vm1691 = vcmp.lt.s32.totalorder %v1689, 256
        %vm1692 = vmand %vm1690, %vm1691
        %1693 = vst.msk [vmem:[%s155] sm:$0x3] %vm1692, %v1687
        %p1694 = scmp.lt.s32.totalorder %s14, 1
        %s1695 = scalar_select %p1694, %s14, 1
        %s1696 = smul.addr %s1695, 2
        %s1697 = scalar_lea.vmem %s2, %s1696
        // Predicated region
        $region33: #{_spatial_attention_fwd.1} parent=27 // pred_check
          %p1698 = pneg %p79
        $region34: #{_spatial_attention_fwd.1} parent=27 // pred_check_branch
          %1700 = sbr.rel (%p1698) target = $region36
        $region35: #{_spatial_attention_fwd.1} parent=27 // pred_region
          _
        $region36: #{_spatial_attention_fwd.1} parent=27 // pred_fallthru
          _
      $region28: #{_spatial_attention_fwd.1} parent=5 // pred_fallthru
        _
      %p1701 = scmp.le.s32.totalorder 2, %s9
      // Predicated region
      $region37: #{_spatial_attention_fwd.1} parent=5 // pred_check
        %p1702 = pneg %p1701
      $region38: #{_spatial_attention_fwd.1} parent=5 // pred_check_branch
        %1704 = sbr.rel (%p1702) target = $region40
      $region39: #{_spatial_attention_fwd.1} parent=5 // pred_region
        %s1705 = ssub.s32 %s9, 2
        // Predicated region
        $region41: #{_spatial_attention_fwd.1} parent=39 // pred_check
          %p1706 = pneg %p85
        $region42: #{_spatial_attention_fwd.1} parent=39 // pred_check_branch
          %1708 = sbr.rel (%p1706) target = $region44
        $region43: #{_spatial_attention_fwd.1} parent=39 // pred_region
          %p1709 = scmp.lt.s32.totalorder %s15, 1
          %s1710 = scalar_select %p1709, %s15, 1
          %s1711 = smul.addr %s1710, 2
          %s1712 = scalar_lea.vmem %s2, %s1711
        $region44: #{_spatial_attention_fwd.1} parent=39 // pred_fallthru
          _
      $region40: #{_spatial_attention_fwd.1} parent=5 // pred_fallthru
        _
    $region6: #{_spatial_attention_fwd.1} parent=1 // loop_footer
      %s13 = sadd.s32 1, %s9
    $region7: #{_spatial_attention_fwd.1} parent=1 // loop_footer_branch
      %8 = sbr.rel target = $region3
    $region8: #{_spatial_attention_fwd.1} parent=1 // loop_exit
      _
    %1713 = vsyncpa [#allocation3], 1
    %s1714 = scalar_lea.sflag [#allocation3], 1
    %1715 = vsyncpa %s1714, 1

</llo_original>
